<compile_context>
chip_gen: v5e
topology: v5e:2x2
jax: 0.10.0
libtpu: 0.0.40
codegen_flags: <defaults>
</compile_context>

<pallas_src>
import functools
import math

import jax
import jax.numpy as jnp
from jax import lax
from jax.experimental import pallas as pl
from jax.experimental.pallas import tpu as pltpu


def _cr_fiqa_kernel(label_ref, inv_e_ref, inv_w_ref, emb_ref, w_ref,
                    cos_ref, dist_ref, maxneg_ref,
                    *, s: float, cos_m: float, sin_m: float):
    j = pl.program_id(1)

    # Raw (bf16) tiles go straight to the MXU, accumulating in f32.
    raw = jnp.dot(emb_ref[...], w_ref[...], preferred_element_type=jnp.float32)
    # Hoisted L2 normalization: scale by the precomputed reciprocal norms.
    cos = raw * inv_e_ref[...] * inv_w_ref[...]                       # (TN, TC)
    cos = jnp.clip(cos, -1.0, 1.0)

    tn, tc = cos.shape
    # Fold validity into the label: rows with label == -1 never match the iota.
    local_lbl = label_ref[...] - j * tc                               # (TN, 1)
    col = lax.broadcasted_iota(jnp.int32, (tn, tc), 1)
    is_target = col == local_lbl                                      # (TN, TC)

    # Per-row target cosine inside this class tile (0 if target not here).
    tgt = jnp.sum(jnp.where(is_target, cos, 0.0), axis=-1, keepdims=True)  # (TN,1)

    # Margin only on the (TN, 1) target column via the exact identity
    # cos(theta + m) = cos*cos(m) - sin(theta)*sin(m), sin(theta) >= 0 for
    # theta in [0, pi].  Rows whose target is not in this tile ignore phi
    # through the where() below.
    sin_t = jnp.sqrt(jnp.maximum(1.0 - tgt * tgt, 0.0))
    phi = tgt * jnp.float32(cos_m) - sin_t * jnp.float32(sin_m)            # (TN,1)

    cos_ref[...] = (jnp.where(is_target, phi, cos) * jnp.float32(s)
                    ).astype(cos_ref.dtype)

    # Hardest negative inside this tile (target column masked to -1e-12).
    neg = jnp.max(jnp.where(is_target, jnp.float32(-1e-12), cos),
                  axis=-1, keepdims=True)

    # (TN, 1) side outputs stay resident across the class (reduction) axis.
    @pl.when(j == 0)
    def _():
        dist_ref[...] = tgt
        maxneg_ref[...] = neg

    @pl.when(j != 0)
    def _():
        dist_ref[...] = dist_ref[...] + tgt
        maxneg_ref[...] = jnp.maximum(maxneg_ref[...], neg)


def _pick_tile(dim, candidates):
    for t in candidates:
        if t <= dim and dim % t == 0:
            return t
    return dim


def _vmem_capacity_bytes():
    try:
        return int(pltpu.get_tpu_info().vmem_capacity_bytes)
    except Exception:
        return 64 << 20          # conservative fallback (v7x physical VMEM)


def cr_fiqa_forward(embeddings, weight, label, s=64.0, m=0.5, *,
                    tn=None, tc=None,
                    mxu_dtype=jnp.bfloat16, out_dtype=jnp.float32):
    """Pallas TPU implementation of CR_FIQA_LOSS.forward.

    embeddings: (N, D) float32 / bfloat16
    weight:     (D, C) float32 / bfloat16   (the nn.Parameter `kernel`)
    label:      (N,)   int class indices; -1 marks an unlabeled row (no margin)
    returns (s*cos(theta+m) (N,C), 0, distmat (N,1) f32, max_negative (N,1) f32)
    """
    n, d = embeddings.shape
    d2, c = weight.shape
    assert d == d2, (embeddings.shape, weight.shape)

    # --- tile selection --------------------------------------------------
    if tn is None:
        # Never shrink the MXU M dim below 128; pad the batch instead.
        tn = 256 if n >= 256 else 128
        # TODO(synk): on v7x prefer tn <= N/2 for large N so the "parallel"
        # batch axis spans both TensorCores.
    n_pad = -(-n // tn) * tn

    cap = _vmem_capacity_bytes()
    budget = int(0.75 * cap)                 # ~48 MiB on v7x, ~96 MiB on v5e/v6e
    in_elt = jnp.dtype(mxu_dtype).itemsize
    out_elt = jnp.dtype(out_dtype).itemsize

    def _block_bytes(tc_):                   # double-buffered per-step footprint
        return 2 * (in_elt * (tn * d + d * tc_) + out_elt * tn * tc_
                    + 4 * (3 * tn + tc_))

    if tc is None:
        tc = _pick_tile(c, (2048, 1024, 512, 256, 128))
        while tc > 128 and c % (tc // 2) == 0 and _block_bytes(tc) > budget:
            tc //= 2                          # big-D safety valve (esp. v7x)
    assert c % tc == 0, (c, tc)

    vmem_limit = int(min(max(2 * _block_bytes(tc), 32 << 20), budget))

    # --- pad batch to a multiple of tn with label = -1 rows ---------------
    pad = n_pad - n
    emb = embeddings
    lbl = label.astype(jnp.int32)
    if pad:
        emb = jnp.concatenate([emb, jnp.ones((pad, d), emb.dtype)], axis=0)
        lbl = jnp.concatenate([lbl, jnp.full((pad,), -1, jnp.int32)], axis=0)
    lbl2d = lbl.reshape(n_pad, 1)

    # --- hoisted L2 normalization (reciprocal norms, computed once) -------
    e32 = emb.astype(jnp.float32)
    w32 = weight.astype(jnp.float32)
    inv_e = 1.0 / jnp.sqrt(jnp.sum(e32 * e32, axis=1, keepdims=True))   # (Np, 1)
    inv_w = 1.0 / jnp.sqrt(jnp.sum(w32 * w32, axis=0, keepdims=True))   # (1, C)

    emb_mxu = emb.astype(mxu_dtype)
    w_mxu = weight.astype(mxu_dtype)

    kernel = functools.partial(
        _cr_fiqa_kernel, s=float(s),
        cos_m=math.cos(float(m)), sin_m=math.sin(float(m)))

    cos_out, dist, maxneg = pl.pallas_call(
        kernel,
        out_shape=(
            jax.ShapeDtypeStruct((n_pad, c), out_dtype),
            jax.ShapeDtypeStruct((n_pad, 1), jnp.float32),
            jax.ShapeDtypeStruct((n_pad, 1), jnp.float32),
        ),
        grid_spec=pltpu.PrefetchScalarGridSpec(
            num_scalar_prefetch=0,
            grid=(n_pad // tn, c // tc),
            in_specs=[
                pl.BlockSpec((tn, 1), lambda i, j: (i, 0)),    # labels
                pl.BlockSpec((tn, 1), lambda i, j: (i, 0)),    # 1 / |e_row|
                pl.BlockSpec((1, tc), lambda i, j: (0, j)),    # 1 / |w_col|
                pl.BlockSpec((tn, d), lambda i, j: (i, 0)),    # embeddings (bf16)
                pl.BlockSpec((d, tc), lambda i, j: (0, j)),    # kernel weight (bf16)
            ],
            out_specs=(
                pl.BlockSpec((tn, tc), lambda i, j: (i, j)),   # s*cos(theta+m)
                pl.BlockSpec((tn, 1), lambda i, j: (i, 0)),    # distmat (resident)
                pl.BlockSpec((tn, 1), lambda i, j: (i, 0)),    # max_negative (resident)
            ),
        ),
        compiler_params=pltpu.CompilerParams(
            dimension_semantics=("parallel", "arbitrary"),
            vmem_limit_bytes=vmem_limit,
        ),
    )(lbl2d, inv_e, inv_w, emb_mxu, w_mxu)

    # TODO(synk): PyTorch returns distmat/max_negative only for rows with
    # label != -1 (data-dependent output shape); here they are emitted for all
    # rows (margin is still masked per-row) and callers mask/slice as needed.
    if pad:
        cos_out = cos_out[:n]
        dist = dist[:n]
        maxneg = maxneg[:n]
    return cos_out, 0, dist, maxneg


def _reference(embeddings, weight, label, s, m):
    # Pure-JAX mirror of the PyTorch forward (rows emitted for every sample;
    # label == -1 rows get no margin, distmat 0, max over all classes).
    e = embeddings.astype(jnp.float32)
    w = weight.astype(jnp.float32)
    e = e / jnp.linalg.norm(e, axis=1, keepdims=True)
    w = w / jnp.linalg.norm(w, axis=0, keepdims=True)
    cos = jnp.clip(jnp.dot(e, w, precision=lax.Precision.HIGHEST), -1.0, 1.0)
    n, c = cos.shape
    valid = (label >= 0)
    onehot = (jax.nn.one_hot(jnp.where(valid, label, 0), c, dtype=jnp.float32)
              * valid[:, None].astype(jnp.float32))
    out = s * jnp.cos(jnp.arccos(cos) + m * onehot)
    dist = jnp.sum(cos * onehot, axis=1, keepdims=True)
    maxneg = jnp.max(jnp.where(onehot > 0, jnp.float32(-1e-12), cos),
                     axis=1, keepdims=True)
    return out, dist, maxneg


if __name__ == "__main__":
    key = jax.random.PRNGKey(0)
    k_emb, k_w, k_lbl = jax.random.split(key, 3)

    N, D, C = 16, 128, 256          # batch, in_features, out_features (classes)
    S, M = 64.0, 0.5

    embeddings = jax.random.normal(k_emb, (N, D), dtype=jnp.float32)
    weight = 0.01 * jax.random.normal(k_w, (D, C), dtype=jnp.float32)
    label = jax.random.randint(k_lbl, (N,), 0, C, dtype=jnp.int32)
    label = label.at[-1].set(-1)    # one unlabeled row (no margin applied)

    # tc=128 -> class-axis grid of 2: exercises the resident (TN, 1)
    # accumulators; the batch is padded up to TN=128 internally.
    cos_out, zero, dist, maxneg = cr_fiqa_forward(
        embeddings, weight, label, s=S, m=M, tc=128)
    jax.block_until_ready((cos_out, dist, maxneg))

    ref_out, ref_dist, ref_maxneg = _reference(embeddings, weight, label, S, M)
    assert zero == 0
    assert cos_out.shape == (N, C) and dist.shape == (N, 1) and maxneg.shape == (N, 1)
    # bf16 MXU operands with f32 accumulation: allow ~1e-2-scale cosine error
    # (x64 on the scaled logits).
    assert jnp.allclose(cos_out, ref_out, rtol=2e-2, atol=0.5), \
        float(jnp.max(jnp.abs(cos_out - ref_out)))
    assert jnp.allclose(dist, ref_dist, rtol=2e-2, atol=2e-2), \
        float(jnp.max(jnp.abs(dist - ref_dist)))
    assert jnp.allclose(maxneg, ref_maxneg, rtol=2e-2, atol=2e-2), \
        float(jnp.max(jnp.abs(maxneg - ref_maxneg)))

    print("KERNEL_OK")
</pallas_src>

<mosaic_0001>
module attributes {stable_mosaic.version = 11 : i64} {
  func.func @_cr_fiqa_kernel(%arg0: i32, %arg1: i32, %arg2: memref<128x1xi32, #tpu.memory_space<vmem>>, %arg3: memref<128x1xf32, #tpu.memory_space<vmem>>, %arg4: memref<1x128xf32, #tpu.memory_space<vmem>>, %arg5: memref<128x128xbf16, #tpu.memory_space<vmem>>, %arg6: memref<128x128xbf16, #tpu.memory_space<vmem>>, %arg7: memref<128x128xf32, #tpu.memory_space<vmem>>, %arg8: memref<128x1xf32, #tpu.memory_space<vmem>>, %arg9: memref<128x1xf32, #tpu.memory_space<vmem>>) attributes {dimension_semantics = [#tpu.dimension_semantics<parallel>, #tpu.dimension_semantics<arbitrary>], iteration_bounds = array<i64: 1, 2>, scalar_prefetch = 0 : i64, scratch_operands = 0 : i64, tpu.core_type = #tpu.core_type<tc>, window_params = [{transform_indices = @transform_0, window_bounds = array<i64: 128, 1>}, {transform_indices = @transform_1, window_bounds = array<i64: 128, 1>}, {transform_indices = @transform_2, window_bounds = array<i64: 1, 128>}, {transform_indices = @transform_3, window_bounds = array<i64: 128, 128>}, {transform_indices = @transform_4, window_bounds = array<i64: 128, 128>}, {transform_indices = @transform_5, window_bounds = array<i64: 128, 128>}, {transform_indices = @transform_6, window_bounds = array<i64: 128, 1>}, {transform_indices = @transform_7, window_bounds = array<i64: 128, 1>}]} {
    %c0 = arith.constant 0 : index
    %c0_0 = arith.constant 0 : index
    %0 = vector.load %arg5[%c0, %c0_0] : memref<128x128xbf16, #tpu.memory_space<vmem>>, vector<128x128xbf16>
    %c0_1 = arith.constant 0 : index
    %c0_2 = arith.constant 0 : index
    %1 = vector.load %arg6[%c0_1, %c0_2] : memref<128x128xbf16, #tpu.memory_space<vmem>>, vector<128x128xbf16>
    %cst = arith.constant dense<0.000000e+00> : vector<128x128xf32>
    %2 = tpu.matmul %0, %1, %cst {dimension_numbers = #tpu.dot_dimension_numbers<[1], [0], [0], [1], [0, 0, 1, 1], [], []>} : vector<128x128xbf16>, vector<128x128xbf16>, vector<128x128xf32> -> vector<128x128xf32>
    %c0_3 = arith.constant 0 : index
    %c0_4 = arith.constant 0 : index
    %3 = vector.load %arg3[%c0_3, %c0_4] : memref<128x1xf32, #tpu.memory_space<vmem>>, vector<128x1xf32>
    %4 = vector.broadcast %3 : vector<128x1xf32> to vector<128x128xf32>
    %5 = arith.mulf %2, %4 : vector<128x128xf32>
    %c0_5 = arith.constant 0 : index
    %c0_6 = arith.constant 0 : index
    %6 = vector.load %arg4[%c0_5, %c0_6] : memref<1x128xf32, #tpu.memory_space<vmem>>, vector<1x128xf32>
    %7 = vector.broadcast %6 : vector<1x128xf32> to vector<128x128xf32>
    %8 = arith.mulf %5, %7 : vector<128x128xf32>
    %cst_7 = arith.constant -1.000000e+00 : f32
    %cst_8 = arith.constant 1.000000e+00 : f32
    %9 = vector.broadcast %cst_7 : f32 to vector<128x128xf32>
    %10 = arith.maximumf %9, %8 : vector<128x128xf32>
    %11 = vector.broadcast %cst_8 : f32 to vector<128x128xf32>
    %12 = arith.minimumf %11, %10 : vector<128x128xf32>
    %c0_9 = arith.constant 0 : index
    %c0_10 = arith.constant 0 : index
    %13 = vector.load %arg2[%c0_9, %c0_10] : memref<128x1xi32, #tpu.memory_space<vmem>>, vector<128x1xi32>
    %c128_i32 = arith.constant 128 : i32
    %14 = arith.muli %arg1, %c128_i32 : i32
    %15 = vector.broadcast %14 : i32 to vector<128x1xi32>
    %16 = arith.subi %13, %15 : vector<128x1xi32>
    %17 = tpu.iota {dimensions = array<i32: 1>} : vector<128x128xi32>
    %18 = vector.broadcast %16 : vector<128x1xi32> to vector<128x128xi32>
    %19 = arith.cmpi eq, %17, %18 : vector<128x128xi32>
    %cst_11 = arith.constant 0.000000e+00 : f32
    %20 = vector.broadcast %cst_11 : f32 to vector<128x128xf32>
    %21 = arith.select %19, %12, %20 : vector<128x128xi1>, vector<128x128xf32>
    %cst_12 = arith.constant dense<0.000000e+00> : vector<128xf32>
    %22 = vector.multi_reduction <add>, %21, %cst_12 [1] : vector<128x128xf32> to vector<128xf32>
    %23 = vector.shape_cast %22 : vector<128xf32> to vector<128x1xf32>
    %24 = arith.mulf %23, %23 : vector<128x1xf32>
    %cst_13 = arith.constant 1.000000e+00 : f32
    %25 = vector.broadcast %cst_13 : f32 to vector<128x1xf32>
    %26 = arith.subf %25, %24 : vector<128x1xf32>
    %cst_14 = arith.constant 0.000000e+00 : f32
    %27 = vector.broadcast %cst_14 : f32 to vector<128x1xf32>
    %28 = arith.maximumf %26, %27 : vector<128x1xf32>
    %29 = math.sqrt %28 : vector<128x1xf32>
    %cst_15 = arith.constant 0.87758255 : f32
    %30 = vector.broadcast %cst_15 : f32 to vector<128x1xf32>
    %31 = arith.mulf %23, %30 : vector<128x1xf32>
    %cst_16 = arith.constant 0.47942555 : f32
    %32 = vector.broadcast %cst_16 : f32 to vector<128x1xf32>
    %33 = arith.mulf %29, %32 : vector<128x1xf32>
    %34 = arith.subf %31, %33 : vector<128x1xf32>
    %35 = vector.shape_cast %34 : vector<128x1xf32> to vector<128x1xf32>
    %36 = vector.broadcast %35 : vector<128x1xf32> to vector<128x128xf32>
    %37 = arith.select %19, %36, %12 : vector<128x128xi1>, vector<128x128xf32>
    %cst_17 = arith.constant 6.400000e+01 : f32
    %38 = vector.broadcast %cst_17 : f32 to vector<128x128xf32>
    %39 = arith.mulf %37, %38 : vector<128x128xf32>
    %c0_18 = arith.constant 0 : index
    %c0_19 = arith.constant 0 : index
    %40 = vector.load %arg7[%c0_18, %c0_19] : memref<128x128xf32, #tpu.memory_space<vmem>>, vector<128x128xf32>
    tpu.vector_store %arg7[%c0_18, %c0_19], %39 {strides = array<i32>} : memref<128x128xf32, #tpu.memory_space<vmem>>, vector<128x128xf32>,
    %cst_20 = arith.constant -9.99999996E-13 : f32
    %41 = vector.broadcast %cst_20 : f32 to vector<128x128xf32>
    %42 = arith.select %19, %41, %12 : vector<128x128xi1>, vector<128x128xf32>
    %cst_21 = arith.constant dense<0xFF800000> : vector<128xf32>
    %43 = vector.multi_reduction <maximumf>, %42, %cst_21 [1] : vector<128x128xf32> to vector<128xf32>
    %44 = vector.shape_cast %43 : vector<128xf32> to vector<128x1xf32>
    %c0_i32 = arith.constant 0 : i32
    %45 = arith.cmpi eq, %arg1, %c0_i32 : i32
    %46 = arith.extui %45 : i1 to i32
    %c0_i32_22 = arith.constant 0 : i32
    %47 = arith.cmpi ne, %46, %c0_i32_22 : i32
    scf.if %47 {
      %c0_25 = arith.constant 0 : index
      %c0_26 = arith.constant 0 : index
      %51 = vector.load %arg8[%c0_25, %c0_26] : memref<128x1xf32, #tpu.memory_space<vmem>>, vector<128x1xf32>
      tpu.vector_store %arg8[%c0_25, %c0_26], %23 {strides = array<i32>} : memref<128x1xf32, #tpu.memory_space<vmem>>, vector<128x1xf32>,
      %c0_27 = arith.constant 0 : index
      %c0_28 = arith.constant 0 : index
      %52 = vector.load %arg9[%c0_27, %c0_28] : memref<128x1xf32, #tpu.memory_space<vmem>>, vector<128x1xf32>
      tpu.vector_store %arg9[%c0_27, %c0_28], %44 {strides = array<i32>} : memref<128x1xf32, #tpu.memory_space<vmem>>, vector<128x1xf32>,
    } else {
    }
    %c0_i32_23 = arith.constant 0 : i32
    %48 = arith.cmpi ne, %arg1, %c0_i32_23 : i32
    %49 = arith.extui %48 : i1 to i32
    %c0_i32_24 = arith.constant 0 : i32
    %50 = arith.cmpi ne, %49, %c0_i32_24 : i32
    scf.if %50 {
      %c0_25 = arith.constant 0 : index
      %c0_26 = arith.constant 0 : index
      %51 = vector.load %arg8[%c0_25, %c0_26] : memref<128x1xf32, #tpu.memory_space<vmem>>, vector<128x1xf32>
      %52 = arith.addf %51, %23 : vector<128x1xf32>
      %c0_27 = arith.constant 0 : index
      %c0_28 = arith.constant 0 : index
      %53 = vector.load %arg8[%c0_27, %c0_28] : memref<128x1xf32, #tpu.memory_space<vmem>>, vector<128x1xf32>
      tpu.vector_store %arg8[%c0_27, %c0_28], %52 {strides = array<i32>} : memref<128x1xf32, #tpu.memory_space<vmem>>, vector<128x1xf32>,
      %c0_29 = arith.constant 0 : index
      %c0_30 = arith.constant 0 : index
      %54 = vector.load %arg9[%c0_29, %c0_30] : memref<128x1xf32, #tpu.memory_space<vmem>>, vector<128x1xf32>
      %55 = arith.maximumf %54, %44 : vector<128x1xf32>
      %c0_31 = arith.constant 0 : index
      %c0_32 = arith.constant 0 : index
      %56 = vector.load %arg9[%c0_31, %c0_32] : memref<128x1xf32, #tpu.memory_space<vmem>>, vector<128x1xf32>
      tpu.vector_store %arg9[%c0_31, %c0_32], %55 {strides = array<i32>} : memref<128x1xf32, #tpu.memory_space<vmem>>, vector<128x1xf32>,
    } else {
    }
    return
  }
  func.func @transform_0(%arg0: i32, %arg1: i32) -> (i32, i32) {
    %c0_i32 = arith.constant 0 : i32
    %c0_i32_0 = arith.constant 0 : i32
    return %arg0, %c0_i32 : i32, i32
  }
  func.func @transform_1(%arg0: i32, %arg1: i32) -> (i32, i32) {
    %c0_i32 = arith.constant 0 : i32
    %c0_i32_0 = arith.constant 0 : i32
    return %arg0, %c0_i32 : i32, i32
  }
  func.func @transform_2(%arg0: i32, %arg1: i32) -> (i32, i32) {
    %c0_i32 = arith.constant 0 : i32
    %c0_i32_0 = arith.constant 0 : i32
    return %c0_i32, %arg1 : i32, i32
  }
  func.func @transform_3(%arg0: i32, %arg1: i32) -> (i32, i32) {
    %c0_i32 = arith.constant 0 : i32
    %c0_i32_0 = arith.constant 0 : i32
    return %arg0, %c0_i32 : i32, i32
  }
  func.func @transform_4(%arg0: i32, %arg1: i32) -> (i32, i32) {
    %c0_i32 = arith.constant 0 : i32
    %c0_i32_0 = arith.constant 0 : i32
    return %c0_i32, %arg1 : i32, i32
  }
  func.func @transform_5(%arg0: i32, %arg1: i32) -> (i32, i32) {
    %c0_i32 = arith.constant 0 : i32
    return %arg0, %arg1 : i32, i32
  }
  func.func @transform_6(%arg0: i32, %arg1: i32) -> (i32, i32) {
    %c0_i32 = arith.constant 0 : i32
    %c0_i32_0 = arith.constant 0 : i32
    return %arg0, %c0_i32 : i32, i32
  }
  func.func @transform_7(%arg0: i32, %arg1: i32) -> (i32, i32) {
    %c0_i32 = arith.constant 0 : i32
    %c0_i32_0 = arith.constant 0 : i32
    return %arg0, %c0_i32 : i32, i32
  }
}

</mosaic_0001>

<llo_original>
// kernel: tpu_custom_call.1
$region0: #{tpu_custom_call.1}
  #allocation0 [shape = 'u32[]', space=smem, size = 0x4, offset = 0x4, fixed_abs, tag = 'smem constant byte address 0x4 - core index']
  #allocation1 [shape = 'u32[72,128]{1,0:T(1,128)}', space=vmem, size = 0x9000, scoped, tag = 'internal scratch']
  %s0 = inlined_call_operand.vmem [shape: s32[128,1], index: 0, kind: input, shape index: {}]
  %s1 = inlined_call_operand.vmem [shape: f32[128,1], index: 1, kind: input, shape index: {}]
  %s2 = inlined_call_operand.vmem [shape: f32[1,256], index: 2, kind: input, shape index: {}]
  %s3 = inlined_call_operand.vmem [shape: bf16[128,128], index: 3, kind: input, shape index: {}]
  %s4 = inlined_call_operand.vmem [shape: bf16[128,256], index: 4, kind: input, shape index: {}]
  %s5 = inlined_call_operand.hbm [shape: f32[128,256], index: 5, kind: output, shape index: {0}]
  %s6 = inlined_call_operand.vmem [shape: f32[128,1], index: 6, kind: output, shape index: {1}]
  %s7 = inlined_call_operand.vmem [shape: f32[128,1], index: 7, kind: output, shape index: {2}]
  %8 = xla_tuple %s5, %s6, %s7
  %s9 = sld [smem:[#allocation0]]
  $region118: #{tpu_custom_call.1} parent=0
    _
  %s11 = ssub.s32 1, %s9
  %s12 = scalar_select 0, %s11, %s9
  $region1: #{tpu_custom_call.1} parent=0
    #allocation2 [shape = 'u8[65536]{0}', space=vmem, size = 0x10000, scoped, tag = 'input window, operand 4']
    #allocation3 [shape = 'u8[131072]{0}', space=vmem, size = 0x20000, scoped, tag = 'output window, operand 0']
    #allocation4 [shape = 's32[2]{0}', space=sflag, size = 0x8, scoped, tag = 'scoped memory for tpu_custom_call.1']
    %13 = vsyncpa [#allocation4], 0
    %s14 = scalar_lea.sflag [#allocation4], 1
    %15 = vsyncpa %s14, 0
    loop: start=0, step=1, limit=4
    $region2: #{tpu_custom_call.1} parent=1 // loop_pre_header
      _
    $region3: #{tpu_custom_call.1} parent=1 // loop_header
      %s17 = sphi 0, %s21
      %p18 = scmp.ge.s32.totalorder %s17, 4
      %s24 = sphi 0, %s36
      %s25 = sphi 0, %s32
      %s26 = sphi 0, %s24
      %s27 = sphi 0, %s25
      %s28 = sphi 0, %s26
      %s29 = sphi 0, %s27
      %s39 = sphi 0, %s41
      %s42 = sphi 0, %s39
      %s43 = sphi 0, %s42
      %s59 = sphi 0, %s43
      %s65 = sphi 0, %s67
      %s68 = sphi 0, %s65
      %s69 = sphi 0, %s68
      %s85 = sphi 0, %s69
      %s91 = sphi 0, %s93
      %s94 = sphi 0, %s91
      %s95 = sphi 0, %s94
      %s111 = sphi 0, %s95
      %s117 = sphi 0, %s119
      %s120 = sphi 0, %s117
      %s121 = sphi 0, %s120
      %s137 = sphi 0, %s121
      %s143 = sphi 0, %s145
      %s146 = sphi 0, %s143
      %s147 = sphi 0, %s146
      %s163 = sphi 0, %s147
      %s171 = sphi 0, %s173
      %s174 = sphi 0, %s171
      %s175 = sphi 0, %s174
      %s191 = sphi 0, %s175
      %s197 = sphi 0, %s199
      %s200 = sphi 0, %s197
      %s201 = sphi 0, %s200
      %s217 = sphi 0, %s201
      %s223 = sphi 0, %s225
      %s226 = sphi 0, %s223
      %s227 = sphi 0, %s226
      %s243 = sphi 0, %s227
    $region4: #{tpu_custom_call.1} parent=1 // loop_header_branch
      %20 = sbr.rel (%p18) target = $region8
    $region5: #{tpu_custom_call.1} parent=1 // loop_body
      %s22 = ssub.s32 %s17, 1
      %s23 = ssub.s32 %s17, 2
      %s30 = sadd.s32 1, %s25
      %p31 = scmp.ge.s32.totalorder %s30, 2
      %s32 = scalar_select %p31, 0, %s30
      %s33 = sadd.s32 1, %s24
      %s34 = scalar_select %p31, %s33, %s24
      %p35 = scmp.ge.s32.totalorder %s34, 1
      %s36 = scalar_select %p35, 0, %s34
      %s37 = ssub.s32 %s24, %s36
      %p38 = scmp.eq.s32.totalorder %s37, 0
      %s40 = sadd.s32 %s39, 1
      %s41 = scalar_select %p38, %s39, %s40
      %p44 = pneg %p38
      %p45 = scmp.eq.s32.totalorder %s17, 1
      %p46 = por %p44, %p45
      %p47 = scmp.ne.s32.totalorder %s39, %s42
      %p48 = scmp.eq.s32.totalorder %s17, 0
      %p49 = por %p47, %p48
      %p50 = scmp.ne.s32.totalorder %s39, %s42
      %p51 = scmp.eq.s32.totalorder %s22, 1
      %p52 = por %p50, %p51
      %p53 = scmp.ne.s32.totalorder %s42, %s43
      %p54 = scmp.eq.s32.totalorder %s22, 0
      %p55 = por %p53, %p54
      %p56 = scmp.ne.s32.totalorder %s42, %s43
      %p57 = scmp.eq.s32.totalorder %s23, 1
      %p58 = por %p56, %p57
      %p60 = scmp.ne.s32.totalorder %s43, %s59
      %p61 = scmp.eq.s32.totalorder %s23, 0
      %p62 = por %p60, %p61
      %s63 = ssub.s32 %s24, %s36
      %p64 = scmp.eq.s32.totalorder %s63, 0
      %s66 = sadd.s32 %s65, 1
      %s67 = scalar_select %p64, %s65, %s66
      %p70 = pneg %p64
      %p71 = scmp.eq.s32.totalorder %s17, 1
      %p72 = por %p70, %p71
      %p73 = scmp.ne.s32.totalorder %s65, %s68
      %p74 = scmp.eq.s32.totalorder %s17, 0
      %p75 = por %p73, %p74
      %p76 = scmp.ne.s32.totalorder %s65, %s68
      %p77 = scmp.eq.s32.totalorder %s22, 1
      %p78 = por %p76, %p77
      %p79 = scmp.ne.s32.totalorder %s68, %s69
      %p80 = scmp.eq.s32.totalorder %s22, 0
      %p81 = por %p79, %p80
      %p82 = scmp.ne.s32.totalorder %s68, %s69
      %p83 = scmp.eq.s32.totalorder %s23, 1
      %p84 = por %p82, %p83
      %p86 = scmp.ne.s32.totalorder %s69, %s85
      %p87 = scmp.eq.s32.totalorder %s23, 0
      %p88 = por %p86, %p87
      %s89 = ssub.s32 %s25, %s32
      %p90 = scmp.eq.s32.totalorder %s89, 0
      %s92 = sadd.s32 %s91, 1
      %s93 = scalar_select %p90, %s91, %s92
      %p96 = pneg %p90
      %p97 = scmp.eq.s32.totalorder %s17, 1
      %p98 = por %p96, %p97
      %p99 = scmp.ne.s32.totalorder %s91, %s94
      %p100 = scmp.eq.s32.totalorder %s17, 0
      %p101 = por %p99, %p100
      %p102 = scmp.ne.s32.totalorder %s91, %s94
      %p103 = scmp.eq.s32.totalorder %s22, 1
      %p104 = por %p102, %p103
      %p105 = scmp.ne.s32.totalorder %s94, %s95
      %p106 = scmp.eq.s32.totalorder %s22, 0
      %p107 = por %p105, %p106
      %p108 = scmp.ne.s32.totalorder %s94, %s95
      %p109 = scmp.eq.s32.totalorder %s23, 1
      %p110 = por %p108, %p109
      %p112 = scmp.ne.s32.totalorder %s95, %s111
      %p113 = scmp.eq.s32.totalorder %s23, 0
      %p114 = por %p112, %p113
      %s115 = ssub.s32 %s24, %s36
      %p116 = scmp.eq.s32.totalorder %s115, 0
      %s118 = sadd.s32 %s117, 1
      %s119 = scalar_select %p116, %s117, %s118
      %p122 = pneg %p116
      %p123 = scmp.eq.s32.totalorder %s17, 1
      %p124 = por %p122, %p123
      %p125 = scmp.ne.s32.totalorder %s117, %s120
      %p126 = scmp.eq.s32.totalorder %s17, 0
      %p127 = por %p125, %p126
      %p128 = scmp.ne.s32.totalorder %s117, %s120
      %p129 = scmp.eq.s32.totalorder %s22, 1
      %p130 = por %p128, %p129
      %p131 = scmp.ne.s32.totalorder %s120, %s121
      %p132 = scmp.eq.s32.totalorder %s22, 0
      %p133 = por %p131, %p132
      %p134 = scmp.ne.s32.totalorder %s120, %s121
      %p135 = scmp.eq.s32.totalorder %s23, 1
      %p136 = por %p134, %p135
      %p138 = scmp.ne.s32.totalorder %s121, %s137
      %p139 = scmp.eq.s32.totalorder %s23, 0
      %p140 = por %p138, %p139
      %s141 = ssub.s32 %s25, %s32
      %p142 = scmp.eq.s32.totalorder %s141, 0
      %s144 = sadd.s32 %s143, 1
      %s145 = scalar_select %p142, %s143, %s144
      %p148 = pneg %p142
      %p149 = scmp.eq.s32.totalorder %s17, 1
      %p150 = por %p148, %p149
      %p151 = scmp.ne.s32.totalorder %s143, %s146
      %p152 = scmp.eq.s32.totalorder %s17, 0
      %p153 = por %p151, %p152
      %p154 = scmp.ne.s32.totalorder %s143, %s146
      %p155 = scmp.eq.s32.totalorder %s22, 1
      %p156 = por %p154, %p155
      %p157 = scmp.ne.s32.totalorder %s146, %s147
      %p158 = scmp.eq.s32.totalorder %s22, 0
      %p159 = por %p157, %p158
      %p160 = scmp.ne.s32.totalorder %s146, %s147
      %p161 = scmp.eq.s32.totalorder %s23, 1
      %p162 = por %p160, %p161
      %p164 = scmp.ne.s32.totalorder %s147, %s163
      %p165 = scmp.eq.s32.totalorder %s23, 0
      %p166 = por %p164, %p165
      %s167 = ssub.s32 %s24, %s36
      %s168 = ssub.s32 %s25, %s32
      %s169 = sor.u32 %s167, %s168
      %p170 = scmp.eq.s32.totalorder %s169, 0
      %s172 = sadd.s32 %s171, 1
      %s173 = scalar_select %p170, %s171, %s172
      %p176 = pneg %p170
      %p177 = scmp.eq.s32.totalorder %s17, 1
      %p178 = por %p176, %p177
      %p179 = scmp.ne.s32.totalorder %s171, %s174
      %p180 = scmp.eq.s32.totalorder %s17, 0
      %p181 = por %p179, %p180
      %p182 = scmp.ne.s32.totalorder %s171, %s174
      %p183 = scmp.eq.s32.totalorder %s22, 1
      %p184 = por %p182, %p183
      %p185 = scmp.ne.s32.totalorder %s174, %s175
      %p186 = scmp.eq.s32.totalorder %s22, 0
      %p187 = por %p185, %p186
      %p188 = scmp.ne.s32.totalorder %s174, %s175
      %p189 = scmp.eq.s32.totalorder %s23, 1
      %p190 = por %p188, %p189
      %p192 = scmp.ne.s32.totalorder %s175, %s191
      %p193 = scmp.eq.s32.totalorder %s23, 0
      %p194 = por %p192, %p193
      %s195 = ssub.s32 %s24, %s36
      %p196 = scmp.eq.s32.totalorder %s195, 0
      %s198 = sadd.s32 %s197, 1
      %s199 = scalar_select %p196, %s197, %s198
      %p202 = pneg %p196
      %p203 = scmp.eq.s32.totalorder %s17, 1
      %p204 = por %p202, %p203
      %p205 = scmp.ne.s32.totalorder %s197, %s200
      %p206 = scmp.eq.s32.totalorder %s17, 0
      %p207 = por %p205, %p206
      %p208 = scmp.ne.s32.totalorder %s197, %s200
      %p209 = scmp.eq.s32.totalorder %s22, 1
      %p210 = por %p208, %p209
      %p211 = scmp.ne.s32.totalorder %s200, %s201
      %p212 = scmp.eq.s32.totalorder %s22, 0
      %p213 = por %p211, %p212
      %p214 = scmp.ne.s32.totalorder %s200, %s201
      %p215 = scmp.eq.s32.totalorder %s23, 1
      %p216 = por %p214, %p215
      %p218 = scmp.ne.s32.totalorder %s201, %s217
      %p219 = scmp.eq.s32.totalorder %s23, 0
      %p220 = por %p218, %p219
      %s221 = ssub.s32 %s24, %s36
      %p222 = scmp.eq.s32.totalorder %s221, 0
      %s224 = sadd.s32 %s223, 1
      %s225 = scalar_select %p222, %s223, %s224
      %p228 = pneg %p222
      %p229 = scmp.eq.s32.totalorder %s17, 1
      %p230 = por %p228, %p229
      %p231 = scmp.ne.s32.totalorder %s223, %s226
      %p232 = scmp.eq.s32.totalorder %s17, 0
      %p233 = por %p231, %p232
      %p234 = scmp.ne.s32.totalorder %s223, %s226
      %p235 = scmp.eq.s32.totalorder %s22, 1
      %p236 = por %p234, %p235
      %p237 = scmp.ne.s32.totalorder %s226, %s227
      %p238 = scmp.eq.s32.totalorder %s22, 0
      %p239 = por %p237, %p238
      %p240 = scmp.ne.s32.totalorder %s226, %s227
      %p241 = scmp.eq.s32.totalorder %s23, 1
      %p242 = por %p240, %p241
      %p244 = scmp.ne.s32.totalorder %s227, %s243
      %p245 = scmp.eq.s32.totalorder %s23, 0
      %p246 = por %p244, %p245
      %p247 = scmp.le.s32.totalorder 1, %s17
      %p248 = scmp.lt.s32.totalorder %s17, 3
      %p249 = pnand %p247, %p248
      %p250 = pneg %p249
      // Predicated region
      $region9: #{tpu_custom_call.1} parent=5 // pred_check
        _
      $region10: #{tpu_custom_call.1} parent=5 // pred_check_branch
        %252 = sbr.rel (%p249) target = $region12
      $region11: #{tpu_custom_call.1} parent=5 // pred_region
        %s253 = ssub.s32 %s17, 1
        // Predicated region
        $region13: #{tpu_custom_call.1} parent=11 // pred_check
          %p254 = pneg %p55
        $region14: #{tpu_custom_call.1} parent=11 // pred_check_branch
          %256 = sbr.rel (%p254) target = $region16
        $region15: #{tpu_custom_call.1} parent=11 // pred_region
          %s257 = smul.u32 16, %s26
          %p258 = scmp.lt.s32.totalorder %s257, 15
          %s259 = scalar_select %p258, %s257, 15
          %s260 = smul.addr %s259, 8
          %s261 = scalar_lea.vmem %s0, %s260
          %s262 = smul.u32 16, %s26
        $region16: #{tpu_custom_call.1} parent=11 // pred_fallthru
          _
        // Predicated region
        $region17: #{tpu_custom_call.1} parent=11 // pred_check
          %p263 = pneg %p81
        $region18: #{tpu_custom_call.1} parent=11 // pred_check_branch
          %265 = sbr.rel (%p263) target = $region20
        $region19: #{tpu_custom_call.1} parent=11 // pred_region
          %s266 = smul.u32 16, %s26
          %p267 = scmp.lt.s32.totalorder %s266, 15
          %s268 = scalar_select %p267, %s266, 15
          %s269 = smul.addr %s268, 8
          %s270 = scalar_lea.vmem %s1, %s269
          %s271 = smul.u32 16, %s26
        $region20: #{tpu_custom_call.1} parent=11 // pred_fallthru
          _
        // Predicated region
        $region21: #{tpu_custom_call.1} parent=11 // pred_check
          %p272 = pneg %p133
        $region22: #{tpu_custom_call.1} parent=11 // pred_check_branch
          %274 = sbr.rel (%p272) target = $region24
        $region23: #{tpu_custom_call.1} parent=11 // pred_region
          %s275 = smul.u32 16, %s26
          %p276 = scmp.lt.s32.totalorder %s275, 15
          %s277 = scalar_select %p276, %s275, 15
          %s278 = smul.addr %s277, 4
          %s279 = scalar_lea.vmem %s3, %s278
          %s280 = smul.u32 16, %s26
        $region24: #{tpu_custom_call.1} parent=11 // pred_fallthru
          _
      $region12: #{tpu_custom_call.1} parent=5 // pred_fallthru
        _
      %p281 = scmp.lt.s32.totalorder %s17, 2
      // Predicated region
      $region25: #{tpu_custom_call.1} parent=5 // pred_check
        %p282 = pneg %p281
      $region26: #{tpu_custom_call.1} parent=5 // pred_check_branch
        %284 = sbr.rel (%p282) target = $region28
      $region27: #{tpu_custom_call.1} parent=5 // pred_region
        // Predicated region
        $region29: #{tpu_custom_call.1} parent=27 // pred_check
          %p285 = pneg %p101
        $region30: #{tpu_custom_call.1} parent=27 // pred_check_branch
          %287 = sbr.rel (%p285) target = $region32
        $region31: #{tpu_custom_call.1} parent=27 // pred_region
          %p288 = scmp.lt.s32.totalorder %s25, 1
          %s289 = scalar_select %p288, %s25, 1
          %s290 = scalar_lea.vmem %s2, %s289
        $region32: #{tpu_custom_call.1} parent=27 // pred_fallthru
          _
        // Predicated region
        $region33: #{tpu_custom_call.1} parent=27 // pred_check
          %p291 = pneg %p153
        $region34: #{tpu_custom_call.1} parent=27 // pred_check_branch
          %293 = sbr.rel (%p291) target = $region36
        $region35: #{tpu_custom_call.1} parent=27 // pred_region
          %s294 = sand.u32 %s143, 1
          %s295 = sand.u32 %s143, 1
          %s296 = smul.addr %s295, 64
          %s297 = scalar_lea.vmem [#allocation2], %s296
          %s298 = smul.addr %s25, 4
          %s299 = scalar_lea.vmem %s4, %s298
          // Predicated region
          $region37: #{tpu_custom_call.1} parent=35 // pred_check
            _
          $region38: #{tpu_custom_call.1} parent=35 // pred_check_branch
            %301 = sbr.rel (0) target = $region40
          $region39: #{tpu_custom_call.1} parent=35 // pred_region
            // Predicated region
            $region41: #{tpu_custom_call.1} parent=39 // pred_check
              _
            $region42: #{tpu_custom_call.1} parent=39 // pred_check_branch
              %303 = sbr.rel target = $region44
            $region43: #{tpu_custom_call.1} parent=39 // pred_region
              // Predicated region
              $region56: #{tpu_custom_call.1} parent=43 // pred_check
                _
              $region57: #{tpu_custom_call.1} parent=43 // pred_check_branch
                %349 = sbr.rel (0) target = $region59
              $region58: #{tpu_custom_call.1} parent=43 // pred_region
                loop: start=0, step=1, limit=1
                $region60: #{tpu_custom_call.1} parent=58 // loop_pre_header
                  _
                $region61: #{tpu_custom_call.1} parent=58 // loop_header
                  %s351 = sphi 0, %s355
                  %p352 = scmp.ge.s32.totalorder %s351, 1
                  %s356 = sphi %s299, %s299
                  %s357 = sphi %s297, %s297
                $region62: #{tpu_custom_call.1} parent=58 // loop_header_branch
                  %354 = sbr.rel (%p352) target = $region66
                $region63: #{tpu_custom_call.1} parent=58 // loop_body
                  _
                $region64: #{tpu_custom_call.1} parent=58 // loop_footer
                  %s355 = sadd.s32 1, %s351
                $region65: #{tpu_custom_call.1} parent=58 // loop_footer_branch
                  %350 = sbr.rel target = $region61
                $region66: #{tpu_custom_call.1} parent=58 // loop_exit
                  _
                %s359 = ssub.s32 16, 1
                loop: start=0, step=1, limit=1
                $region67: #{tpu_custom_call.1} parent=58 // loop_pre_header
                  _
                $region68: #{tpu_custom_call.1} parent=58 // loop_header
                  %s361 = sphi 0, %s365
                  %p362 = scmp.ge.s32.totalorder %s361, 1
                  %s366 = sphi %s299, %s299
                  %s367 = sphi %s297, %s297
                $region69: #{tpu_custom_call.1} parent=58 // loop_header_branch
                  %364 = sbr.rel (%p362) target = $region73
                $region70: #{tpu_custom_call.1} parent=58 // loop_body
                  %v368 = vld [vmem:[%s366] sm:%s359]
                  %369 = vst [vmem:[%s367] sm:%s359] %v368
                  %v370 = vld [vmem:[%s366 + $0x8] sm:%s359]
                  %371 = vst [vmem:[%s367 + $0x4] sm:%s359] %v370
                  %v372 = vld [vmem:[%s366 + $0x10] sm:%s359]
                  %373 = vst [vmem:[%s367 + $0x8] sm:%s359] %v372
                  %v374 = vld [vmem:[%s366 + $0x18] sm:%s359]
                  %375 = vst [vmem:[%s367 + $0xc] sm:%s359] %v374
                  %v376 = vld [vmem:[%s366 + $0x20] sm:%s359]
                  %377 = vst [vmem:[%s367 + $0x10] sm:%s359] %v376
                  %v378 = vld [vmem:[%s366 + $0x28] sm:%s359]
                  %379 = vst [vmem:[%s367 + $0x14] sm:%s359] %v378
                  %v380 = vld [vmem:[%s366 + $0x30] sm:%s359]
                  %381 = vst [vmem:[%s367 + $0x18] sm:%s359] %v380
                  %v382 = vld [vmem:[%s366 + $0x38] sm:%s359]
                  %383 = vst [vmem:[%s367 + $0x1c] sm:%s359] %v382
                  %v384 = vld [vmem:[%s366 + $0x40] sm:%s359]
                  %385 = vst [vmem:[%s367 + $0x20] sm:%s359] %v384
                  %v386 = vld [vmem:[%s366 + $0x48] sm:%s359]
                  %387 = vst [vmem:[%s367 + $0x24] sm:%s359] %v386
                  %v388 = vld [vmem:[%s366 + $0x50] sm:%s359]
                  %389 = vst [vmem:[%s367 + $0x28] sm:%s359] %v388
                  %v390 = vld [vmem:[%s366 + $0x58] sm:%s359]
                  %391 = vst [vmem:[%s367 + $0x2c] sm:%s359] %v390
                  %v392 = vld [vmem:[%s366 + $0x60] sm:%s359]
                  %393 = vst [vmem:[%s367 + $0x30] sm:%s359] %v392
                  %v394 = vld [vmem:[%s366 + $0x68] sm:%s359]
                  %395 = vst [vmem:[%s367 + $0x34] sm:%s359] %v394
                  %v396 = vld [vmem:[%s366 + $0x70] sm:%s359]
                  %397 = vst [vmem:[%s367 + $0x38] sm:%s359] %v396
                  %v398 = vld [vmem:[%s366 + $0x78] sm:%s359]
                  %399 = vst [vmem:[%s367 + $0x3c] sm:%s359] %v398
                $region71: #{tpu_custom_call.1} parent=58 // loop_footer
                  %s365 = sadd.s32 1, %s361
                $region72: #{tpu_custom_call.1} parent=58 // loop_footer_branch
                  %360 = sbr.rel target = $region68
                $region73: #{tpu_custom_call.1} parent=58 // loop_exit
                  _
              $region59: #{tpu_custom_call.1} parent=43 // pred_fallthru
                _
            $region44: #{tpu_custom_call.1} parent=39 // pred_fallthru
              _
            // Predicated region
            $region45: #{tpu_custom_call.1} parent=39 // pred_check
              _
            $region46: #{tpu_custom_call.1} parent=39 // pred_check_branch
              %305 = sbr.rel (0) target = $region48
            $region47: #{tpu_custom_call.1} parent=39 // pred_region
              %s307 = ssub.s32 16, 1
              loop: start=0, step=1, limit=1
              $region49: #{tpu_custom_call.1} parent=47 // loop_pre_header
                _
              $region50: #{tpu_custom_call.1} parent=47 // loop_header
                %s309 = sphi 0, %s313
                %p310 = scmp.ge.s32.totalorder %s309, 1
                %s314 = sphi %s299, %s299
                %s315 = sphi %s297, %s297
              $region51: #{tpu_custom_call.1} parent=47 // loop_header_branch
                %312 = sbr.rel (%p310) target = $region55
              $region52: #{tpu_custom_call.1} parent=47 // loop_body
                %v316 = vld [vmem:[%s314] sm:%s307]
                %317 = vst [vmem:[%s315] sm:%s307] %v316
                %v318 = vld [vmem:[%s314 + $0x8] sm:%s307]
                %319 = vst [vmem:[%s315 + $0x4] sm:%s307] %v318
                %v320 = vld [vmem:[%s314 + $0x10] sm:%s307]
                %321 = vst [vmem:[%s315 + $0x8] sm:%s307] %v320
                %v322 = vld [vmem:[%s314 + $0x18] sm:%s307]
                %323 = vst [vmem:[%s315 + $0xc] sm:%s307] %v322
                %v324 = vld [vmem:[%s314 + $0x20] sm:%s307]
                %325 = vst [vmem:[%s315 + $0x10] sm:%s307] %v324
                %v326 = vld [vmem:[%s314 + $0x28] sm:%s307]
                %327 = vst [vmem:[%s315 + $0x14] sm:%s307] %v326
                %v328 = vld [vmem:[%s314 + $0x30] sm:%s307]
                %329 = vst [vmem:[%s315 + $0x18] sm:%s307] %v328
                %v330 = vld [vmem:[%s314 + $0x38] sm:%s307]
                %331 = vst [vmem:[%s315 + $0x1c] sm:%s307] %v330
                %v332 = vld [vmem:[%s314 + $0x40] sm:%s307]
                %333 = vst [vmem:[%s315 + $0x20] sm:%s307] %v332
                %v334 = vld [vmem:[%s314 + $0x48] sm:%s307]
                %335 = vst [vmem:[%s315 + $0x24] sm:%s307] %v334
                %v336 = vld [vmem:[%s314 + $0x50] sm:%s307]
                %337 = vst [vmem:[%s315 + $0x28] sm:%s307] %v336
                %v338 = vld [vmem:[%s314 + $0x58] sm:%s307]
                %339 = vst [vmem:[%s315 + $0x2c] sm:%s307] %v338
                %v340 = vld [vmem:[%s314 + $0x60] sm:%s307]
                %341 = vst [vmem:[%s315 + $0x30] sm:%s307] %v340
                %v342 = vld [vmem:[%s314 + $0x68] sm:%s307]
                %343 = vst [vmem:[%s315 + $0x34] sm:%s307] %v342
                %v344 = vld [vmem:[%s314 + $0x70] sm:%s307]
                %345 = vst [vmem:[%s315 + $0x38] sm:%s307] %v344
                %v346 = vld [vmem:[%s314 + $0x78] sm:%s307]
                %347 = vst [vmem:[%s315 + $0x3c] sm:%s307] %v346
              $region53: #{tpu_custom_call.1} parent=47 // loop_footer
                %s313 = sadd.s32 1, %s309
              $region54: #{tpu_custom_call.1} parent=47 // loop_footer_branch
                %308 = sbr.rel target = $region50
              $region55: #{tpu_custom_call.1} parent=47 // loop_exit
                _
            $region48: #{tpu_custom_call.1} parent=39 // pred_fallthru
              _
          $region40: #{tpu_custom_call.1} parent=35 // pred_fallthru
            _
          %400 = vnop
        $region36: #{tpu_custom_call.1} parent=27 // pred_fallthru
          _
      $region28: #{tpu_custom_call.1} parent=5 // pred_fallthru
        _
      %p401 = scmp.le.s32.totalorder 1, %s17
      %p402 = scmp.lt.s32.totalorder %s17, 3
      %p403 = pnand %p401, %p402
      %p404 = pneg %p403
      // Predicated region
      $region74: #{tpu_custom_call.1} parent=5 // pred_check
        _
      $region75: #{tpu_custom_call.1} parent=5 // pred_check_branch
        %406 = sbr.rel (%p403) target = $region77
      $region76: #{tpu_custom_call.1} parent=5 // pred_region
        %s407 = ssub.s32 %s17, 1
        %s408 = sand.u32 %s146, 1
        %s409 = sand.u32 %s146, 1
        %s410 = smul.addr %s409, 64
        %s411 = scalar_lea.vmem [#allocation2], %s410
        // Predicated region
        $region78: #{tpu_custom_call.1} parent=76 // pred_check
          %p412 = pneg %p159
        $region79: #{tpu_custom_call.1} parent=76 // pred_check_branch
          %414 = sbr.rel (%p412) target = $region81
        $region80: #{tpu_custom_call.1} parent=76 // pred_region
          _
        $region81: #{tpu_custom_call.1} parent=76 // pred_fallthru
          _
        %s415 = smul.u32 16, %s26
        %p416 = scmp.lt.s32.totalorder %s415, 15
        %s417 = scalar_select %p416, %s415, 15
        %s418 = smul.addr %s417, 8
        %s419 = scalar_lea.vmem %s0, %s418
        %p420 = pneg %p55
        %p421 = pneg %p52
        %s422 = smul.u32 16, %s26
        %p423 = scmp.lt.s32.totalorder %s422, 15
        %s424 = scalar_select %p423, %s422, 15
        %s425 = smul.addr %s424, 8
        %s426 = scalar_lea.vmem %s1, %s425
        %p427 = pneg %p81
        %p428 = pneg %p78
        %p429 = scmp.lt.s32.totalorder %s27, 1
        %s430 = scalar_select %p429, %s27, 1
        %s431 = scalar_lea.vmem %s2, %s430
        %p432 = pneg %p107
        %p433 = pneg %p104
        %s434 = smul.u32 16, %s26
        %p435 = scmp.lt.s32.totalorder %s434, 15
        %s436 = scalar_select %p435, %s434, 15
        %s437 = smul.addr %s436, 4
        %s438 = scalar_lea.vmem %s3, %s437
        %p439 = pneg %p133
        %p440 = pneg %p130
        %s441 = sand.u32 %s146, 1
        %s442 = sand.u32 %s146, 1
        %s443 = smul.addr %s442, 64
        %s444 = scalar_lea.vmem [#allocation2], %s443
        %p445 = pneg %p159
        %p446 = pneg %p156
        %p447 = pneg %p187
        %p448 = pneg %p184
        %s449 = sand.u32 %s174, 1
        %s450 = scalar_lea.sflag [#allocation4], %s449
        %s451 = sand.u32 %s174, 1
        %s452 = smul.addr %s451, 128
        %s453 = scalar_lea.vmem [#allocation3], %s452
        %p454 = pneg %p213
        %p455 = pneg %p210
        %s456 = smul.u32 16, %s26
        %p457 = scmp.lt.s32.totalorder %s456, 15
        %s458 = scalar_select %p457, %s456, 15
        %s459 = smul.addr %s458, 8
        %s460 = scalar_lea.vmem %s6, %s459
        %p461 = pneg %p239
        %p462 = pneg %p236
        %s463 = smul.u32 16, %s26
        %p464 = scmp.lt.s32.totalorder %s463, 15
        %s465 = scalar_select %p464, %s463, 15
        %s466 = smul.addr %s465, 8
        %s467 = scalar_lea.vmem %s7, %s466
        %s468 = smul.u32 16, %s26
        %p469 = scmp.lt.s32.totalorder %s468, 15
        %s470 = scalar_select %p469, %s468, 15
        %s471 = smul.addr %s470, 8
        %s472 = scalar_lea.vmem %s0, %s471
        %s473 = smul.u32 16, %s26
        %s474 = smul.u32 16, %s26
        %p475 = scmp.lt.s32.totalorder %s474, 15
        %s476 = scalar_select %p475, %s474, 15
        %s477 = smul.addr %s476, 8
        %s478 = scalar_lea.vmem %s1, %s477
        %s479 = smul.u32 16, %s26
        %p480 = scmp.lt.s32.totalorder %s27, 1
        %s481 = scalar_select %p480, %s27, 1
        %s482 = scalar_lea.vmem %s2, %s481
        %s483 = smul.u32 16, %s26
        %p484 = scmp.lt.s32.totalorder %s483, 15
        %s485 = scalar_select %p484, %s483, 15
        %s486 = smul.addr %s485, 4
        %s487 = scalar_lea.vmem %s3, %s486
        %s488 = smul.u32 16, %s26
        %s489 = smul.u32 16, %s26
        %s490 = smul.u32 16, %s26
        %p491 = scmp.lt.s32.totalorder %s490, 15
        %s492 = scalar_select %p491, %s490, 15
        %s493 = smul.addr %s492, 8
        %s494 = scalar_lea.vmem %s6, %s493
        %s495 = smul.u32 16, %s26
        %s496 = smul.u32 16, %s26
        %p497 = scmp.lt.s32.totalorder %s496, 15
        %s498 = scalar_select %p497, %s496, 15
        %s499 = smul.addr %s498, 8
        %s500 = scalar_lea.vmem %s7, %s499
        %s501 = smul.u32 16, %s26
        %v502 = vld [vmem:[%s487] sm:$0xf]
        %v503 = vld [vmem:[%s487 + $0x4] sm:$0xf]
        %v504 = vld [vmem:[%s487 + $0x8] sm:$0xf]
        %v505 = vld [vmem:[%s487 + $0xc] sm:$0xf]
        %v506 = vld [vmem:[%s487 + $0x10] sm:$0xf]
        %v507 = vld [vmem:[%s487 + $0x14] sm:$0xf]
        %v508 = vld [vmem:[%s487 + $0x18] sm:$0xf]
        %v509 = vld [vmem:[%s487 + $0x1c] sm:$0xf]
        %v510 = vld [vmem:[%s487 + $0x20] sm:$0xf]
        %v511 = vld [vmem:[%s487 + $0x24] sm:$0xf]
        %v512 = vld [vmem:[%s487 + $0x28] sm:$0xf]
        %v513 = vld [vmem:[%s487 + $0x2c] sm:$0xf]
        %v514 = vld [vmem:[%s487 + $0x30] sm:$0xf]
        %v515 = vld [vmem:[%s487 + $0x34] sm:$0xf]
        %v516 = vld [vmem:[%s487 + $0x38] sm:$0xf]
        %v517 = vld [vmem:[%s487 + $0x3c] sm:$0xf]
        %v518 = vld [vmem:[%s411] sm:$0xf]
        %v519 = vld [vmem:[%s411 + $0x4] sm:$0xf]
        %v520 = vld [vmem:[%s411 + $0x8] sm:$0xf]
        %v521 = vld [vmem:[%s411 + $0xc] sm:$0xf]
        %v522 = vld [vmem:[%s411 + $0x10] sm:$0xf]
        %v523 = vld [vmem:[%s411 + $0x14] sm:$0xf]
        %v524 = vld [vmem:[%s411 + $0x18] sm:$0xf]
        %v525 = vld [vmem:[%s411 + $0x1c] sm:$0xf]
        %v526 = vld [vmem:[%s411 + $0x20] sm:$0xf]
        %v527 = vld [vmem:[%s411 + $0x24] sm:$0xf]
        %v528 = vld [vmem:[%s411 + $0x28] sm:$0xf]
        %v529 = vld [vmem:[%s411 + $0x2c] sm:$0xf]
        %v530 = vld [vmem:[%s411 + $0x30] sm:$0xf]
        %v531 = vld [vmem:[%s411 + $0x34] sm:$0xf]
        %v532 = vld [vmem:[%s411 + $0x38] sm:$0xf]
        %v533 = vld [vmem:[%s411 + $0x3c] sm:$0xf]
        %v550 = vunpack.c.l.b16 %v502
        %v551 = vunpack.c.l.b16 %v503
        %v552 = vunpack.c.l.b16 %v504
        %v553 = vunpack.c.l.b16 %v505
        %v554 = vunpack.c.l.b16 %v506
        %v555 = vunpack.c.l.b16 %v507
        %v556 = vunpack.c.l.b16 %v508
        %v557 = vunpack.c.l.b16 %v509
        %v558 = vunpack.c.l.b16 %v510
        %v559 = vunpack.c.l.b16 %v511
        %v560 = vunpack.c.l.b16 %v512
        %v561 = vunpack.c.l.b16 %v513
        %v562 = vunpack.c.l.b16 %v514
        %v563 = vunpack.c.l.b16 %v515
        %v564 = vunpack.c.l.b16 %v516
        %v565 = vunpack.c.l.b16 %v517
        %v566 = vpack.c.b16 %v551, %v550
        %v567 = vpack.c.b16 %v553, %v552
        %v568 = vpack.c.b16 %v555, %v554
        %v569 = vpack.c.b16 %v557, %v556
        %v570 = vpack.c.b16 %v559, %v558
        %v571 = vpack.c.b16 %v561, %v560
        %v572 = vpack.c.b16 %v563, %v562
        %v573 = vpack.c.b16 %v565, %v564
        %v598 = vunpack.c.l.b16 %v518
        %v599 = vunpack.c.l.b16 %v519
        %v600 = vunpack.c.l.b16 %v520
        %v601 = vunpack.c.l.b16 %v521
        %v602 = vunpack.c.l.b16 %v522
        %v603 = vunpack.c.l.b16 %v523
        %v604 = vunpack.c.l.b16 %v524
        %v605 = vunpack.c.l.b16 %v525
        %v606 = vunpack.c.l.b16 %v526
        %v607 = vunpack.c.l.b16 %v527
        %v608 = vunpack.c.l.b16 %v528
        %v609 = vunpack.c.l.b16 %v529
        %v610 = vunpack.c.l.b16 %v530
        %v611 = vunpack.c.l.b16 %v531
        %v612 = vunpack.c.l.b16 %v532
        %v613 = vunpack.c.l.b16 %v533
        %v614 = vpack.c.b16 %v599, %v598
        %v615 = vpack.c.b16 %v601, %v600
        %v616 = vpack.c.b16 %v603, %v602
        %v617 = vpack.c.b16 %v605, %v604
        %v618 = vpack.c.b16 %v607, %v606
        %v619 = vpack.c.b16 %v609, %v608
        %v620 = vpack.c.b16 %v611, %v610
        %v621 = vpack.c.b16 %v613, %v612
        %630 = vmatpush.bf16.msra.mxu0 %v621
        %631 = vmatpush.bf16.msra.mxu0 %v620
        %632 = vmatpush.bf16.msra.mxu0 %v619
        %633 = vmatpush.bf16.msra.mxu0 %v618
        %634 = vmatpush.bf16.msra.mxu0 %v617
        %635 = vmatpush.bf16.msra.mxu0 %v616
        %636 = vmatpush.bf16.msra.mxu0 %v615
        %637 = vmatpush.bf16.msra.mxu0 %v614
        %638 = vmatmul.bf16.gmra.mxu0 %v566
        %v639 = vpop.f32.mrf.mxu0
        %v640 = vadd.f32 0.0, %v639
        %v641 = vpop.f32.mrf.mxu0
        %v642 = vadd.f32 0.0, %v641
        %643 = vmatmul.bf16.gmra.mxu0 %v567
        %v644 = vpop.f32.mrf.mxu0
        %v645 = vadd.f32 0.0, %v644
        %v646 = vpop.f32.mrf.mxu0
        %v647 = vadd.f32 0.0, %v646
        %648 = vmatmul.bf16.gmra.mxu0 %v568
        %v649 = vpop.f32.mrf.mxu0
        %v650 = vadd.f32 0.0, %v649
        %v651 = vpop.f32.mrf.mxu0
        %v652 = vadd.f32 0.0, %v651
        %653 = vmatmul.bf16.gmra.mxu0 %v569
        %v654 = vpop.f32.mrf.mxu0
        %v655 = vadd.f32 0.0, %v654
        %v656 = vpop.f32.mrf.mxu0
        %v657 = vadd.f32 0.0, %v656
        %658 = vmatmul.bf16.gmra.mxu0 %v570
        %v659 = vpop.f32.mrf.mxu0
        %v660 = vadd.f32 0.0, %v659
        %v661 = vpop.f32.mrf.mxu0
        %v662 = vadd.f32 0.0, %v661
        %663 = vmatmul.bf16.gmra.mxu0 %v571
        %v664 = vpop.f32.mrf.mxu0
        %v665 = vadd.f32 0.0, %v664
        %v666 = vpop.f32.mrf.mxu0
        %v667 = vadd.f32 0.0, %v666
        %668 = vmatmul.bf16.gmra.mxu0 %v572
        %v669 = vpop.f32.mrf.mxu0
        %v670 = vadd.f32 0.0, %v669
        %v671 = vpop.f32.mrf.mxu0
        %v672 = vadd.f32 0.0, %v671
        %673 = vmatmul.bf16.gmra.mxu0 %v573
        %v674 = vpop.f32.mrf.mxu0
        %v675 = vadd.f32 0.0, %v674
        %v676 = vpop.f32.mrf.mxu0
        %v677 = vadd.f32 0.0, %v676
        %678 = vdwg.mxu0
        %v679 = vld [vmem:[%s478] sm:$0xff]
        %v680 = vld [vmem:[%s478 + $0x8] sm:$0xff]
        %v681 = vld [vmem:[%s478 + $0x10] sm:$0xff]
        %v682 = vld [vmem:[%s478 + $0x18] sm:$0xff]
        %v683 = vld [vmem:[%s478 + $0x20] sm:$0xff]
        %v684 = vld [vmem:[%s478 + $0x28] sm:$0xff]
        %v685 = vld [vmem:[%s478 + $0x30] sm:$0xff]
        %v686 = vld [vmem:[%s478 + $0x38] sm:$0xff]
        %v687 = vld [vmem:[%s478 + $0x40] sm:$0xff]
        %v688 = vld [vmem:[%s478 + $0x48] sm:$0xff]
        %v689 = vld [vmem:[%s478 + $0x50] sm:$0xff]
        %v690 = vld [vmem:[%s478 + $0x58] sm:$0xff]
        %v691 = vld [vmem:[%s478 + $0x60] sm:$0xff]
        %v692 = vld [vmem:[%s478 + $0x68] sm:$0xff]
        %v693 = vld [vmem:[%s478 + $0x70] sm:$0xff]
        %v694 = vld [vmem:[%s478 + $0x78] sm:$0xff]
        %696 = vset.pattern.permute.xlu0 0
        %697 = vperm.xlu0 %696, %v679
        %v698 = vpop.permute.xlu0 %697
        %701 = vset.pattern.permute.xlu0 0
        %702 = vperm.xlu0 %701, %v680
        %v703 = vpop.permute.xlu0 %702
        %706 = vset.pattern.permute.xlu0 0
        %707 = vperm.xlu0 %706, %v681
        %v708 = vpop.permute.xlu0 %707
        %711 = vset.pattern.permute.xlu0 0
        %712 = vperm.xlu0 %711, %v682
        %v713 = vpop.permute.xlu0 %712
        %716 = vset.pattern.permute.xlu0 0
        %717 = vperm.xlu0 %716, %v683
        %v718 = vpop.permute.xlu0 %717
        %721 = vset.pattern.permute.xlu0 0
        %722 = vperm.xlu0 %721, %v684
        %v723 = vpop.permute.xlu0 %722
        %726 = vset.pattern.permute.xlu0 0
        %727 = vperm.xlu0 %726, %v685
        %v728 = vpop.permute.xlu0 %727
        %731 = vset.pattern.permute.xlu0 0
        %732 = vperm.xlu0 %731, %v686
        %v733 = vpop.permute.xlu0 %732
        %736 = vset.pattern.permute.xlu0 0
        %737 = vperm.xlu0 %736, %v687
        %v738 = vpop.permute.xlu0 %737
        %741 = vset.pattern.permute.xlu0 0
        %742 = vperm.xlu0 %741, %v688
        %v743 = vpop.permute.xlu0 %742
        %746 = vset.pattern.permute.xlu0 0
        %747 = vperm.xlu0 %746, %v689
        %v748 = vpop.permute.xlu0 %747
        %751 = vset.pattern.permute.xlu0 0
        %752 = vperm.xlu0 %751, %v690
        %v753 = vpop.permute.xlu0 %752
        %756 = vset.pattern.permute.xlu0 0
        %757 = vperm.xlu0 %756, %v691
        %v758 = vpop.permute.xlu0 %757
        %761 = vset.pattern.permute.xlu0 0
        %762 = vperm.xlu0 %761, %v692
        %v763 = vpop.permute.xlu0 %762
        %766 = vset.pattern.permute.xlu0 0
        %767 = vperm.xlu0 %766, %v693
        %v768 = vpop.permute.xlu0 %767
        %771 = vset.pattern.permute.xlu0 0
        %772 = vperm.xlu0 %771, %v694
        %v773 = vpop.permute.xlu0 %772
        %v775 = vmul.f32 %v640, %v698
        %v776 = vmul.f32 %v642, %v703
        %v777 = vmul.f32 %v645, %v708
        %v778 = vmul.f32 %v647, %v713
        %v779 = vmul.f32 %v650, %v718
        %v780 = vmul.f32 %v652, %v723
        %v781 = vmul.f32 %v655, %v728
        %v782 = vmul.f32 %v657, %v733
        %v783 = vmul.f32 %v660, %v738
        %v784 = vmul.f32 %v662, %v743
        %v785 = vmul.f32 %v665, %v748
        %v786 = vmul.f32 %v667, %v753
        %v787 = vmul.f32 %v670, %v758
        %v788 = vmul.f32 %v672, %v763
        %v789 = vmul.f32 %v675, %v768
        %v790 = vmul.f32 %v677, %v773
        %v791 = vld [vmem:[%s482] sm:$0x1]
        %v793 = vperm.slane %v791, 0
        %v795 = vmul.f32 %v775, %v793
        %v796 = vmul.f32 %v776, %v793
        %v797 = vmul.f32 %v777, %v793
        %v798 = vmul.f32 %v778, %v793
        %v799 = vmul.f32 %v779, %v793
        %v800 = vmul.f32 %v780, %v793
        %v801 = vmul.f32 %v781, %v793
        %v802 = vmul.f32 %v782, %v793
        %v803 = vmul.f32 %v783, %v793
        %v804 = vmul.f32 %v784, %v793
        %v805 = vmul.f32 %v785, %v793
        %v806 = vmul.f32 %v786, %v793
        %v807 = vmul.f32 %v787, %v793
        %v808 = vmul.f32 %v788, %v793
        %v809 = vmul.f32 %v789, %v793
        %v810 = vmul.f32 %v790, %v793
        %v811 = vmax.f32 %v795, -1.0
        %v812 = vmax.f32 %v796, -1.0
        %v813 = vmax.f32 %v797, -1.0
        %v814 = vmax.f32 %v798, -1.0
        %v815 = vmax.f32 %v799, -1.0
        %v816 = vmax.f32 %v800, -1.0
        %v817 = vmax.f32 %v801, -1.0
        %v818 = vmax.f32 %v802, -1.0
        %v819 = vmax.f32 %v803, -1.0
        %v820 = vmax.f32 %v804, -1.0
        %v821 = vmax.f32 %v805, -1.0
        %v822 = vmax.f32 %v806, -1.0
        %v823 = vmax.f32 %v807, -1.0
        %v824 = vmax.f32 %v808, -1.0
        %v825 = vmax.f32 %v809, -1.0
        %v826 = vmax.f32 %v810, -1.0
        %v827 = vmin.f32 %v811, 1.0
        %v828 = vmin.f32 %v812, 1.0
        %v829 = vmin.f32 %v813, 1.0
        %v830 = vmin.f32 %v814, 1.0
        %v831 = vmin.f32 %v815, 1.0
        %v832 = vmin.f32 %v816, 1.0
        %v833 = vmin.f32 %v817, 1.0
        %v834 = vmin.f32 %v818, 1.0
        %v835 = vmin.f32 %v819, 1.0
        %v836 = vmin.f32 %v820, 1.0
        %v837 = vmin.f32 %v821, 1.0
        %v838 = vmin.f32 %v822, 1.0
        %v839 = vmin.f32 %v823, 1.0
        %v840 = vmin.f32 %v824, 1.0
        %v841 = vmin.f32 %v825, 1.0
        %v842 = vmin.f32 %v826, 1.0
        %v843 = vld [vmem:[%s472] sm:$0xff]
        %v844 = vld [vmem:[%s472 + $0x8] sm:$0xff]
        %v845 = vld [vmem:[%s472 + $0x10] sm:$0xff]
        %v846 = vld [vmem:[%s472 + $0x18] sm:$0xff]
        %v847 = vld [vmem:[%s472 + $0x20] sm:$0xff]
        %v848 = vld [vmem:[%s472 + $0x28] sm:$0xff]
        %v849 = vld [vmem:[%s472 + $0x30] sm:$0xff]
        %v850 = vld [vmem:[%s472 + $0x38] sm:$0xff]
        %v851 = vld [vmem:[%s472 + $0x40] sm:$0xff]
        %v852 = vld [vmem:[%s472 + $0x48] sm:$0xff]
        %v853 = vld [vmem:[%s472 + $0x50] sm:$0xff]
        %v854 = vld [vmem:[%s472 + $0x58] sm:$0xff]
        %v855 = vld [vmem:[%s472 + $0x60] sm:$0xff]
        %v856 = vld [vmem:[%s472 + $0x68] sm:$0xff]
        %v857 = vld [vmem:[%s472 + $0x70] sm:$0xff]
        %v858 = vld [vmem:[%s472 + $0x78] sm:$0xff]
        %s859 = smul.u32 %s27, 128
        %v860 = vstv %s859
        %v861 = vsub.s32 %v843, %v860
        %v862 = vsub.s32 %v844, %v860
        %v863 = vsub.s32 %v845, %v860
        %v864 = vsub.s32 %v846, %v860
        %v865 = vsub.s32 %v847, %v860
        %v866 = vsub.s32 %v848, %v860
        %v867 = vsub.s32 %v849, %v860
        %v868 = vsub.s32 %v850, %v860
        %v869 = vsub.s32 %v851, %v860
        %v870 = vsub.s32 %v852, %v860
        %v871 = vsub.s32 %v853, %v860
        %v872 = vsub.s32 %v854, %v860
        %v873 = vsub.s32 %v855, %v860
        %v874 = vsub.s32 %v856, %v860
        %v875 = vsub.s32 %v857, %v860
        %v876 = vsub.s32 %v858, %v860
        %v877 = vlaneseq
        %v878 = vand.u32 %v877, 127
        %879 = vset.pattern.permute.xlu0 0
        %880 = vperm.xlu0 %879, %v861
        %v881 = vpop.permute.xlu0 %880
        %882 = vset.pattern.permute.xlu0 0
        %883 = vperm.xlu0 %882, %v862
        %v884 = vpop.permute.xlu0 %883
        %885 = vset.pattern.permute.xlu0 0
        %886 = vperm.xlu0 %885, %v863
        %v887 = vpop.permute.xlu0 %886
        %888 = vset.pattern.permute.xlu0 0
        %889 = vperm.xlu0 %888, %v864
        %v890 = vpop.permute.xlu0 %889
        %891 = vset.pattern.permute.xlu0 0
        %892 = vperm.xlu0 %891, %v865
        %v893 = vpop.permute.xlu0 %892
        %894 = vset.pattern.permute.xlu0 0
        %895 = vperm.xlu0 %894, %v866
        %v896 = vpop.permute.xlu0 %895
        %897 = vset.pattern.permute.xlu0 0
        %898 = vperm.xlu0 %897, %v867
        %v899 = vpop.permute.xlu0 %898
        %900 = vset.pattern.permute.xlu0 0
        %901 = vperm.xlu0 %900, %v868
        %v902 = vpop.permute.xlu0 %901
        %903 = vset.pattern.permute.xlu0 0
        %904 = vperm.xlu0 %903, %v869
        %v905 = vpop.permute.xlu0 %904
        %906 = vset.pattern.permute.xlu0 0
        %907 = vperm.xlu0 %906, %v870
        %v908 = vpop.permute.xlu0 %907
        %909 = vset.pattern.permute.xlu0 0
        %910 = vperm.xlu0 %909, %v871
        %v911 = vpop.permute.xlu0 %910
        %912 = vset.pattern.permute.xlu0 0
        %913 = vperm.xlu0 %912, %v872
        %v914 = vpop.permute.xlu0 %913
        %915 = vset.pattern.permute.xlu0 0
        %916 = vperm.xlu0 %915, %v873
        %v917 = vpop.permute.xlu0 %916
        %918 = vset.pattern.permute.xlu0 0
        %919 = vperm.xlu0 %918, %v874
        %v920 = vpop.permute.xlu0 %919
        %921 = vset.pattern.permute.xlu0 0
        %922 = vperm.xlu0 %921, %v875
        %v923 = vpop.permute.xlu0 %922
        %924 = vset.pattern.permute.xlu0 0
        %925 = vperm.xlu0 %924, %v876
        %v926 = vpop.permute.xlu0 %925
        %vm927 = vcmp.eq.s32.totalorder %v878, %v881
        %vm928 = vcmp.eq.s32.totalorder %v878, %v884
        %vm929 = vcmp.eq.s32.totalorder %v878, %v887
        %vm930 = vcmp.eq.s32.totalorder %v878, %v890
        %vm931 = vcmp.eq.s32.totalorder %v878, %v893
        %vm932 = vcmp.eq.s32.totalorder %v878, %v896
        %vm933 = vcmp.eq.s32.totalorder %v878, %v899
        %vm934 = vcmp.eq.s32.totalorder %v878, %v902
        %vm935 = vcmp.eq.s32.totalorder %v878, %v905
        %vm936 = vcmp.eq.s32.totalorder %v878, %v908
        %vm937 = vcmp.eq.s32.totalorder %v878, %v911
        %vm938 = vcmp.eq.s32.totalorder %v878, %v914
        %vm939 = vcmp.eq.s32.totalorder %v878, %v917
        %vm940 = vcmp.eq.s32.totalorder %v878, %v920
        %vm941 = vcmp.eq.s32.totalorder %v878, %v923
        %vm942 = vcmp.eq.s32.totalorder %v878, %v926
        %v943 = vsel %vm927, %v827, 0.0
        %v944 = vsel %vm928, %v828, 0.0
        %v945 = vsel %vm929, %v829, 0.0
        %v946 = vsel %vm930, %v830, 0.0
        %v947 = vsel %vm931, %v831, 0.0
        %v948 = vsel %vm932, %v832, 0.0
        %v949 = vsel %vm933, %v833, 0.0
        %v950 = vsel %vm934, %v834, 0.0
        %v951 = vsel %vm935, %v835, 0.0
        %v952 = vsel %vm936, %v836, 0.0
        %v953 = vsel %vm937, %v837, 0.0
        %v954 = vsel %vm938, %v838, 0.0
        %v955 = vsel %vm939, %v839, 0.0
        %v956 = vsel %vm940, %v840, 0.0
        %v957 = vsel %vm941, %v841, 0.0
        %v958 = vsel %vm942, %v842, 0.0
        %959 = vadd.xlane.f32.xlu0 %v943
        %v960 = vpop.xlane.xlu0 %959
        %961 = vadd.xlane.f32.xlu0 %v944
        %v962 = vpop.xlane.xlu0 %961
        %963 = vadd.xlane.f32.xlu0 %v945
        %v964 = vpop.xlane.xlu0 %963
        %965 = vadd.xlane.f32.xlu0 %v946
        %v966 = vpop.xlane.xlu0 %965
        %967 = vadd.xlane.f32.xlu0 %v947
        %v968 = vpop.xlane.xlu0 %967
        %969 = vadd.xlane.f32.xlu0 %v948
        %v970 = vpop.xlane.xlu0 %969
        %971 = vadd.xlane.f32.xlu0 %v949
        %v972 = vpop.xlane.xlu0 %971
        %973 = vadd.xlane.f32.xlu0 %v950
        %v974 = vpop.xlane.xlu0 %973
        %975 = vadd.xlane.f32.xlu0 %v951
        %v976 = vpop.xlane.xlu0 %975
        %977 = vadd.xlane.f32.xlu0 %v952
        %v978 = vpop.xlane.xlu0 %977
        %979 = vadd.xlane.f32.xlu0 %v953
        %v980 = vpop.xlane.xlu0 %979
        %981 = vadd.xlane.f32.xlu0 %v954
        %v982 = vpop.xlane.xlu0 %981
        %983 = vadd.xlane.f32.xlu0 %v955
        %v984 = vpop.xlane.xlu0 %983
        %985 = vadd.xlane.f32.xlu0 %v956
        %v986 = vpop.xlane.xlu0 %985
        %987 = vadd.xlane.f32.xlu0 %v957
        %v988 = vpop.xlane.xlu0 %987
        %989 = vadd.xlane.f32.xlu0 %v958
        %v990 = vpop.xlane.xlu0 %989
        %v991 = vmul.f32 %v960, %v960
        %v992 = vmul.f32 %v962, %v962
        %v993 = vmul.f32 %v964, %v964
        %v994 = vmul.f32 %v966, %v966
        %v995 = vmul.f32 %v968, %v968
        %v996 = vmul.f32 %v970, %v970
        %v997 = vmul.f32 %v972, %v972
        %v998 = vmul.f32 %v974, %v974
        %v999 = vmul.f32 %v976, %v976
        %v1000 = vmul.f32 %v978, %v978
        %v1001 = vmul.f32 %v980, %v980
        %v1002 = vmul.f32 %v982, %v982
        %v1003 = vmul.f32 %v984, %v984
        %v1004 = vmul.f32 %v986, %v986
        %v1005 = vmul.f32 %v988, %v988
        %v1006 = vmul.f32 %v990, %v990
        %v1007 = vsub.f32 1.0, %v991
        %v1008 = vsub.f32 1.0, %v992
        %v1009 = vsub.f32 1.0, %v993
        %v1010 = vsub.f32 1.0, %v994
        %v1011 = vsub.f32 1.0, %v995
        %v1012 = vsub.f32 1.0, %v996
        %v1013 = vsub.f32 1.0, %v997
        %v1014 = vsub.f32 1.0, %v998
        %v1015 = vsub.f32 1.0, %v999
        %v1016 = vsub.f32 1.0, %v1000
        %v1017 = vsub.f32 1.0, %v1001
        %v1018 = vsub.f32 1.0, %v1002
        %v1019 = vsub.f32 1.0, %v1003
        %v1020 = vsub.f32 1.0, %v1004
        %v1021 = vsub.f32 1.0, %v1005
        %v1022 = vsub.f32 1.0, %v1006
        %v1023 = vmax.f32 %v1007, 0.0
        %v1024 = vmax.f32 %v1008, 0.0
        %v1025 = vmax.f32 %v1009, 0.0
        %v1026 = vmax.f32 %v1010, 0.0
        %v1027 = vmax.f32 %v1011, 0.0
        %v1028 = vmax.f32 %v1012, 0.0
        %v1029 = vmax.f32 %v1013, 0.0
        %v1030 = vmax.f32 %v1014, 0.0
        %v1031 = vmax.f32 %v1015, 0.0
        %v1032 = vmax.f32 %v1016, 0.0
        %v1033 = vmax.f32 %v1017, 0.0
        %v1034 = vmax.f32 %v1018, 0.0
        %v1035 = vmax.f32 %v1019, 0.0
        %v1036 = vmax.f32 %v1020, 0.0
        %v1037 = vmax.f32 %v1021, 0.0
        %v1038 = vmax.f32 %v1022, 0.0
        %v1039 = vrsqrt.pop %v1023
        %v1040 = vmul.f32 %v1039, %v1023
        %v1041 = vmul.f32 %v1040, %v1039
        %v1042 = vmul.f32 0.5, %v1041
        %v1043 = vsub.f32 1.5, %v1042
        %v1044 = vmul.f32 %v1039, %v1043
        %v1045 = vmul.f32 %v1023, %v1044
        %vm1046 = vcmp.eq.f32.partialorder %v1023, inf
        %v1047 = vsel %vm1046, %v1023, %v1045
        %vm1048 = vcmp.eq.f32.partialorder %v1023, 0.0
        %v1049 = vand.u32 %v1023, 2147483648
        %v1050 = vsel %vm1048, %v1049, %v1047
        %v1051 = vrsqrt.pop %v1024
        %v1052 = vmul.f32 %v1051, %v1024
        %v1053 = vmul.f32 %v1052, %v1051
        %v1054 = vmul.f32 0.5, %v1053
        %v1055 = vsub.f32 1.5, %v1054
        %v1056 = vmul.f32 %v1051, %v1055
        %v1057 = vmul.f32 %v1024, %v1056
        %vm1058 = vcmp.eq.f32.partialorder %v1024, inf
        %v1059 = vsel %vm1058, %v1024, %v1057
        %vm1060 = vcmp.eq.f32.partialorder %v1024, 0.0
        %v1061 = vand.u32 %v1024, 2147483648
        %v1062 = vsel %vm1060, %v1061, %v1059
        %v1063 = vrsqrt.pop %v1025
        %v1064 = vmul.f32 %v1063, %v1025
        %v1065 = vmul.f32 %v1064, %v1063
        %v1066 = vmul.f32 0.5, %v1065
        %v1067 = vsub.f32 1.5, %v1066
        %v1068 = vmul.f32 %v1063, %v1067
        %v1069 = vmul.f32 %v1025, %v1068
        %vm1070 = vcmp.eq.f32.partialorder %v1025, inf
        %v1071 = vsel %vm1070, %v1025, %v1069
        %vm1072 = vcmp.eq.f32.partialorder %v1025, 0.0
        %v1073 = vand.u32 %v1025, 2147483648
        %v1074 = vsel %vm1072, %v1073, %v1071
        %v1075 = vrsqrt.pop %v1026
        %v1076 = vmul.f32 %v1075, %v1026
        %v1077 = vmul.f32 %v1076, %v1075
        %v1078 = vmul.f32 0.5, %v1077
        %v1079 = vsub.f32 1.5, %v1078
        %v1080 = vmul.f32 %v1075, %v1079
        %v1081 = vmul.f32 %v1026, %v1080
        %vm1082 = vcmp.eq.f32.partialorder %v1026, inf
        %v1083 = vsel %vm1082, %v1026, %v1081
        %vm1084 = vcmp.eq.f32.partialorder %v1026, 0.0
        %v1085 = vand.u32 %v1026, 2147483648
        %v1086 = vsel %vm1084, %v1085, %v1083
        %v1087 = vrsqrt.pop %v1027
        %v1088 = vmul.f32 %v1087, %v1027
        %v1089 = vmul.f32 %v1088, %v1087
        %v1090 = vmul.f32 0.5, %v1089
        %v1091 = vsub.f32 1.5, %v1090
        %v1092 = vmul.f32 %v1087, %v1091
        %v1093 = vmul.f32 %v1027, %v1092
        %vm1094 = vcmp.eq.f32.partialorder %v1027, inf
        %v1095 = vsel %vm1094, %v1027, %v1093
        %vm1096 = vcmp.eq.f32.partialorder %v1027, 0.0
        %v1097 = vand.u32 %v1027, 2147483648
        %v1098 = vsel %vm1096, %v1097, %v1095
        %v1099 = vrsqrt.pop %v1028
        %v1100 = vmul.f32 %v1099, %v1028
        %v1101 = vmul.f32 %v1100, %v1099
        %v1102 = vmul.f32 0.5, %v1101
        %v1103 = vsub.f32 1.5, %v1102
        %v1104 = vmul.f32 %v1099, %v1103
        %v1105 = vmul.f32 %v1028, %v1104
        %vm1106 = vcmp.eq.f32.partialorder %v1028, inf
        %v1107 = vsel %vm1106, %v1028, %v1105
        %vm1108 = vcmp.eq.f32.partialorder %v1028, 0.0
        %v1109 = vand.u32 %v1028, 2147483648
        %v1110 = vsel %vm1108, %v1109, %v1107
        %v1111 = vrsqrt.pop %v1029
        %v1112 = vmul.f32 %v1111, %v1029
        %v1113 = vmul.f32 %v1112, %v1111
        %v1114 = vmul.f32 0.5, %v1113
        %v1115 = vsub.f32 1.5, %v1114
        %v1116 = vmul.f32 %v1111, %v1115
        %v1117 = vmul.f32 %v1029, %v1116
        %vm1118 = vcmp.eq.f32.partialorder %v1029, inf
        %v1119 = vsel %vm1118, %v1029, %v1117
        %vm1120 = vcmp.eq.f32.partialorder %v1029, 0.0
        %v1121 = vand.u32 %v1029, 2147483648
        %v1122 = vsel %vm1120, %v1121, %v1119
        %v1123 = vrsqrt.pop %v1030
        %v1124 = vmul.f32 %v1123, %v1030
        %v1125 = vmul.f32 %v1124, %v1123
        %v1126 = vmul.f32 0.5, %v1125
        %v1127 = vsub.f32 1.5, %v1126
        %v1128 = vmul.f32 %v1123, %v1127
        %v1129 = vmul.f32 %v1030, %v1128
        %vm1130 = vcmp.eq.f32.partialorder %v1030, inf
        %v1131 = vsel %vm1130, %v1030, %v1129
        %vm1132 = vcmp.eq.f32.partialorder %v1030, 0.0
        %v1133 = vand.u32 %v1030, 2147483648
        %v1134 = vsel %vm1132, %v1133, %v1131
        %v1135 = vrsqrt.pop %v1031
        %v1136 = vmul.f32 %v1135, %v1031
        %v1137 = vmul.f32 %v1136, %v1135
        %v1138 = vmul.f32 0.5, %v1137
        %v1139 = vsub.f32 1.5, %v1138
        %v1140 = vmul.f32 %v1135, %v1139
        %v1141 = vmul.f32 %v1031, %v1140
        %vm1142 = vcmp.eq.f32.partialorder %v1031, inf
        %v1143 = vsel %vm1142, %v1031, %v1141
        %vm1144 = vcmp.eq.f32.partialorder %v1031, 0.0
        %v1145 = vand.u32 %v1031, 2147483648
        %v1146 = vsel %vm1144, %v1145, %v1143
        %v1147 = vrsqrt.pop %v1032
        %v1148 = vmul.f32 %v1147, %v1032
        %v1149 = vmul.f32 %v1148, %v1147
        %v1150 = vmul.f32 0.5, %v1149
        %v1151 = vsub.f32 1.5, %v1150
        %v1152 = vmul.f32 %v1147, %v1151
        %v1153 = vmul.f32 %v1032, %v1152
        %vm1154 = vcmp.eq.f32.partialorder %v1032, inf
        %v1155 = vsel %vm1154, %v1032, %v1153
        %vm1156 = vcmp.eq.f32.partialorder %v1032, 0.0
        %v1157 = vand.u32 %v1032, 2147483648
        %v1158 = vsel %vm1156, %v1157, %v1155
        %v1159 = vrsqrt.pop %v1033
        %v1160 = vmul.f32 %v1159, %v1033
        %v1161 = vmul.f32 %v1160, %v1159
        %v1162 = vmul.f32 0.5, %v1161
        %v1163 = vsub.f32 1.5, %v1162
        %v1164 = vmul.f32 %v1159, %v1163
        %v1165 = vmul.f32 %v1033, %v1164
        %vm1166 = vcmp.eq.f32.partialorder %v1033, inf
        %v1167 = vsel %vm1166, %v1033, %v1165
        %vm1168 = vcmp.eq.f32.partialorder %v1033, 0.0
        %v1169 = vand.u32 %v1033, 2147483648
        %v1170 = vsel %vm1168, %v1169, %v1167
        %v1171 = vrsqrt.pop %v1034
        %v1172 = vmul.f32 %v1171, %v1034
        %v1173 = vmul.f32 %v1172, %v1171
        %v1174 = vmul.f32 0.5, %v1173
        %v1175 = vsub.f32 1.5, %v1174
        %v1176 = vmul.f32 %v1171, %v1175
        %v1177 = vmul.f32 %v1034, %v1176
        %vm1178 = vcmp.eq.f32.partialorder %v1034, inf
        %v1179 = vsel %vm1178, %v1034, %v1177
        %vm1180 = vcmp.eq.f32.partialorder %v1034, 0.0
        %v1181 = vand.u32 %v1034, 2147483648
        %v1182 = vsel %vm1180, %v1181, %v1179
        %v1183 = vrsqrt.pop %v1035
        %v1184 = vmul.f32 %v1183, %v1035
        %v1185 = vmul.f32 %v1184, %v1183
        %v1186 = vmul.f32 0.5, %v1185
        %v1187 = vsub.f32 1.5, %v1186
        %v1188 = vmul.f32 %v1183, %v1187
        %v1189 = vmul.f32 %v1035, %v1188
        %vm1190 = vcmp.eq.f32.partialorder %v1035, inf
        %v1191 = vsel %vm1190, %v1035, %v1189
        %vm1192 = vcmp.eq.f32.partialorder %v1035, 0.0
        %v1193 = vand.u32 %v1035, 2147483648
        %v1194 = vsel %vm1192, %v1193, %v1191
        %v1195 = vrsqrt.pop %v1036
        %v1196 = vmul.f32 %v1195, %v1036
        %v1197 = vmul.f32 %v1196, %v1195
        %v1198 = vmul.f32 0.5, %v1197
        %v1199 = vsub.f32 1.5, %v1198
        %v1200 = vmul.f32 %v1195, %v1199
        %v1201 = vmul.f32 %v1036, %v1200
        %vm1202 = vcmp.eq.f32.partialorder %v1036, inf
        %v1203 = vsel %vm1202, %v1036, %v1201
        %vm1204 = vcmp.eq.f32.partialorder %v1036, 0.0
        %v1205 = vand.u32 %v1036, 2147483648
        %v1206 = vsel %vm1204, %v1205, %v1203
        %v1207 = vrsqrt.pop %v1037
        %v1208 = vmul.f32 %v1207, %v1037
        %v1209 = vmul.f32 %v1208, %v1207
        %v1210 = vmul.f32 0.5, %v1209
        %v1211 = vsub.f32 1.5, %v1210
        %v1212 = vmul.f32 %v1207, %v1211
        %v1213 = vmul.f32 %v1037, %v1212
        %vm1214 = vcmp.eq.f32.partialorder %v1037, inf
        %v1215 = vsel %vm1214, %v1037, %v1213
        %vm1216 = vcmp.eq.f32.partialorder %v1037, 0.0
        %v1217 = vand.u32 %v1037, 2147483648
        %v1218 = vsel %vm1216, %v1217, %v1215
        %v1219 = vrsqrt.pop %v1038
        %v1220 = vmul.f32 %v1219, %v1038
        %v1221 = vmul.f32 %v1220, %v1219
        %v1222 = vmul.f32 0.5, %v1221
        %v1223 = vsub.f32 1.5, %v1222
        %v1224 = vmul.f32 %v1219, %v1223
        %v1225 = vmul.f32 %v1038, %v1224
        %vm1226 = vcmp.eq.f32.partialorder %v1038, inf
        %v1227 = vsel %vm1226, %v1038, %v1225
        %vm1228 = vcmp.eq.f32.partialorder %v1038, 0.0
        %v1229 = vand.u32 %v1038, 2147483648
        %v1230 = vsel %vm1228, %v1229, %v1227
        %v1231 = vmul.f32 %v960, 0.87758255
        %v1232 = vmul.f32 %v962, 0.87758255
        %v1233 = vmul.f32 %v964, 0.87758255
        %v1234 = vmul.f32 %v966, 0.87758255
        %v1235 = vmul.f32 %v968, 0.87758255
        %v1236 = vmul.f32 %v970, 0.87758255
        %v1237 = vmul.f32 %v972, 0.87758255
        %v1238 = vmul.f32 %v974, 0.87758255
        %v1239 = vmul.f32 %v976, 0.87758255
        %v1240 = vmul.f32 %v978, 0.87758255
        %v1241 = vmul.f32 %v980, 0.87758255
        %v1242 = vmul.f32 %v982, 0.87758255
        %v1243 = vmul.f32 %v984, 0.87758255
        %v1244 = vmul.f32 %v986, 0.87758255
        %v1245 = vmul.f32 %v988, 0.87758255
        %v1246 = vmul.f32 %v990, 0.87758255
        %v1247 = vmul.f32 %v1050, 0.47942555
        %v1248 = vmul.f32 %v1062, 0.47942555
        %v1249 = vmul.f32 %v1074, 0.47942555
        %v1250 = vmul.f32 %v1086, 0.47942555
        %v1251 = vmul.f32 %v1098, 0.47942555
        %v1252 = vmul.f32 %v1110, 0.47942555
        %v1253 = vmul.f32 %v1122, 0.47942555
        %v1254 = vmul.f32 %v1134, 0.47942555
        %v1255 = vmul.f32 %v1146, 0.47942555
        %v1256 = vmul.f32 %v1158, 0.47942555
        %v1257 = vmul.f32 %v1170, 0.47942555
        %v1258 = vmul.f32 %v1182, 0.47942555
        %v1259 = vmul.f32 %v1194, 0.47942555
        %v1260 = vmul.f32 %v1206, 0.47942555
        %v1261 = vmul.f32 %v1218, 0.47942555
        %v1262 = vmul.f32 %v1230, 0.47942555
        %v1263 = vsub.f32 %v1231, %v1247
        %v1264 = vsub.f32 %v1232, %v1248
        %v1265 = vsub.f32 %v1233, %v1249
        %v1266 = vsub.f32 %v1234, %v1250
        %v1267 = vsub.f32 %v1235, %v1251
        %v1268 = vsub.f32 %v1236, %v1252
        %v1269 = vsub.f32 %v1237, %v1253
        %v1270 = vsub.f32 %v1238, %v1254
        %v1271 = vsub.f32 %v1239, %v1255
        %v1272 = vsub.f32 %v1240, %v1256
        %v1273 = vsub.f32 %v1241, %v1257
        %v1274 = vsub.f32 %v1242, %v1258
        %v1275 = vsub.f32 %v1243, %v1259
        %v1276 = vsub.f32 %v1244, %v1260
        %v1277 = vsub.f32 %v1245, %v1261
        %v1278 = vsub.f32 %v1246, %v1262
        %v1279 = vsel %vm927, %v1263, %v827
        %v1280 = vsel %vm928, %v1264, %v828
        %v1281 = vsel %vm929, %v1265, %v829
        %v1282 = vsel %vm930, %v1266, %v830
        %v1283 = vsel %vm931, %v1267, %v831
        %v1284 = vsel %vm932, %v1268, %v832
        %v1285 = vsel %vm933, %v1269, %v833
        %v1286 = vsel %vm934, %v1270, %v834
        %v1287 = vsel %vm935, %v1271, %v835
        %v1288 = vsel %vm936, %v1272, %v836
        %v1289 = vsel %vm937, %v1273, %v837
        %v1290 = vsel %vm938, %v1274, %v838
        %v1291 = vsel %vm939, %v1275, %v839
        %v1292 = vsel %vm940, %v1276, %v840
        %v1293 = vsel %vm941, %v1277, %v841
        %v1294 = vsel %vm942, %v1278, %v842
        %v1295 = vmul.f32 %v1279, 64.0
        %v1296 = vmul.f32 %v1280, 64.0
        %v1297 = vmul.f32 %v1281, 64.0
        %v1298 = vmul.f32 %v1282, 64.0
        %v1299 = vmul.f32 %v1283, 64.0
        %v1300 = vmul.f32 %v1284, 64.0
        %v1301 = vmul.f32 %v1285, 64.0
        %v1302 = vmul.f32 %v1286, 64.0
        %v1303 = vmul.f32 %v1287, 64.0
        %v1304 = vmul.f32 %v1288, 64.0
        %v1305 = vmul.f32 %v1289, 64.0
        %v1306 = vmul.f32 %v1290, 64.0
        %v1307 = vmul.f32 %v1291, 64.0
        %v1308 = vmul.f32 %v1292, 64.0
        %v1309 = vmul.f32 %v1293, 64.0
        %v1310 = vmul.f32 %v1294, 64.0
        %1311 = vst [vmem:[%s453] sm:$0xff] %v1295
        %1312 = vst [vmem:[%s453 + $0x8] sm:$0xff] %v1296
        %1313 = vst [vmem:[%s453 + $0x10] sm:$0xff] %v1297
        %1314 = vst [vmem:[%s453 + $0x18] sm:$0xff] %v1298
        %1315 = vst [vmem:[%s453 + $0x20] sm:$0xff] %v1299
        %1316 = vst [vmem:[%s453 + $0x28] sm:$0xff] %v1300
        %1317 = vst [vmem:[%s453 + $0x30] sm:$0xff] %v1301
        %1318 = vst [vmem:[%s453 + $0x38] sm:$0xff] %v1302
        %1319 = vst [vmem:[%s453 + $0x40] sm:$0xff] %v1303
        %1320 = vst [vmem:[%s453 + $0x48] sm:$0xff] %v1304
        %1321 = vst [vmem:[%s453 + $0x50] sm:$0xff] %v1305
        %1322 = vst [vmem:[%s453 + $0x58] sm:$0xff] %v1306
        %1323 = vst [vmem:[%s453 + $0x60] sm:$0xff] %v1307
        %1324 = vst [vmem:[%s453 + $0x68] sm:$0xff] %v1308
        %1325 = vst [vmem:[%s453 + $0x70] sm:$0xff] %v1309
        %1326 = vst [vmem:[%s453 + $0x78] sm:$0xff] %v1310
        %v1327 = vsel %vm927, -1e-12, %v827
        %v1328 = vsel %vm928, -1e-12, %v828
        %v1329 = vsel %vm929, -1e-12, %v829
        %v1330 = vsel %vm930, -1e-12, %v830
        %v1331 = vsel %vm931, -1e-12, %v831
        %v1332 = vsel %vm932, -1e-12, %v832
        %v1333 = vsel %vm933, -1e-12, %v833
        %v1334 = vsel %vm934, -1e-12, %v834
        %v1335 = vsel %vm935, -1e-12, %v835
        %v1336 = vsel %vm936, -1e-12, %v836
        %v1337 = vsel %vm937, -1e-12, %v837
        %v1338 = vsel %vm938, -1e-12, %v838
        %v1339 = vsel %vm939, -1e-12, %v839
        %v1340 = vsel %vm940, -1e-12, %v840
        %v1341 = vsel %vm941, -1e-12, %v841
        %v1342 = vsel %vm942, -1e-12, %v842
        %1343 = vmax.xlane.f32.xlu0 %v1327
        %v1344 = vpop.xlane.xlu0 %1343
        %1345 = vmax.xlane.f32.xlu0 %v1328
        %v1346 = vpop.xlane.xlu0 %1345
        %1347 = vmax.xlane.f32.xlu0 %v1329
        %v1348 = vpop.xlane.xlu0 %1347
        %1349 = vmax.xlane.f32.xlu0 %v1330
        %v1350 = vpop.xlane.xlu0 %1349
        %1351 = vmax.xlane.f32.xlu0 %v1331
        %v1352 = vpop.xlane.xlu0 %1351
        %1353 = vmax.xlane.f32.xlu0 %v1332
        %v1354 = vpop.xlane.xlu0 %1353
        %1355 = vmax.xlane.f32.xlu0 %v1333
        %v1356 = vpop.xlane.xlu0 %1355
        %1357 = vmax.xlane.f32.xlu0 %v1334
        %v1358 = vpop.xlane.xlu0 %1357
        %1359 = vmax.xlane.f32.xlu0 %v1335
        %v1360 = vpop.xlane.xlu0 %1359
        %1361 = vmax.xlane.f32.xlu0 %v1336
        %v1362 = vpop.xlane.xlu0 %1361
        %1363 = vmax.xlane.f32.xlu0 %v1337
        %v1364 = vpop.xlane.xlu0 %1363
        %1365 = vmax.xlane.f32.xlu0 %v1338
        %v1366 = vpop.xlane.xlu0 %1365
        %1367 = vmax.xlane.f32.xlu0 %v1339
        %v1368 = vpop.xlane.xlu0 %1367
        %1369 = vmax.xlane.f32.xlu0 %v1340
        %v1370 = vpop.xlane.xlu0 %1369
        %1371 = vmax.xlane.f32.xlu0 %v1341
        %v1372 = vpop.xlane.xlu0 %1371
        %1373 = vmax.xlane.f32.xlu0 %v1342
        %v1374 = vpop.xlane.xlu0 %1373
        %p1375 = scmp.eq.s32.totalorder %s27, 0
        // Predicated region
        $region82: #{tpu_custom_call.1} parent=76 // pred_check
          %p1376 = pneg %p1375
        $region83: #{tpu_custom_call.1} parent=76 // pred_check_branch
          %1378 = sbr.rel (%p1376) target = $region85
        $region84: #{tpu_custom_call.1} parent=76 // pred_region
          %vm1379 = vcmask 7168
          %1380 = vst.msk [vmem:[%s494] sm:$0xff] %vm1379, %v960
          %1381 = vst.msk [vmem:[%s494 + $0x8] sm:$0xff] %vm1379, %v962
          %1382 = vst.msk [vmem:[%s494 + $0x10] sm:$0xff] %vm1379, %v964
          %1383 = vst.msk [vmem:[%s494 + $0x18] sm:$0xff] %vm1379, %v966
          %1384 = vst.msk [vmem:[%s494 + $0x20] sm:$0xff] %vm1379, %v968
          %1385 = vst.msk [vmem:[%s494 + $0x28] sm:$0xff] %vm1379, %v970
          %1386 = vst.msk [vmem:[%s494 + $0x30] sm:$0xff] %vm1379, %v972
          %1387 = vst.msk [vmem:[%s494 + $0x38] sm:$0xff] %vm1379, %v974
          %1388 = vst.msk [vmem:[%s494 + $0x40] sm:$0xff] %vm1379, %v976
          %1389 = vst.msk [vmem:[%s494 + $0x48] sm:$0xff] %vm1379, %v978
          %1390 = vst.msk [vmem:[%s494 + $0x50] sm:$0xff] %vm1379, %v980
          %1391 = vst.msk [vmem:[%s494 + $0x58] sm:$0xff] %vm1379, %v982
          %1392 = vst.msk [vmem:[%s494 + $0x60] sm:$0xff] %vm1379, %v984
          %1393 = vst.msk [vmem:[%s494 + $0x68] sm:$0xff] %vm1379, %v986
          %1394 = vst.msk [vmem:[%s494 + $0x70] sm:$0xff] %vm1379, %v988
          %1395 = vst.msk [vmem:[%s494 + $0x78] sm:$0xff] %vm1379, %v990
          %1396 = vst.msk [vmem:[%s500] sm:$0xff] %vm1379, %v1344
          %1397 = vst.msk [vmem:[%s500 + $0x8] sm:$0xff] %vm1379, %v1346
          %1398 = vst.msk [vmem:[%s500 + $0x10] sm:$0xff] %vm1379, %v1348
          %1399 = vst.msk [vmem:[%s500 + $0x18] sm:$0xff] %vm1379, %v1350
          %1400 = vst.msk [vmem:[%s500 + $0x20] sm:$0xff] %vm1379, %v1352
          %1401 = vst.msk [vmem:[%s500 + $0x28] sm:$0xff] %vm1379, %v1354
          %1402 = vst.msk [vmem:[%s500 + $0x30] sm:$0xff] %vm1379, %v1356
          %1403 = vst.msk [vmem:[%s500 + $0x38] sm:$0xff] %vm1379, %v1358
          %1404 = vst.msk [vmem:[%s500 + $0x40] sm:$0xff] %vm1379, %v1360
          %1405 = vst.msk [vmem:[%s500 + $0x48] sm:$0xff] %vm1379, %v1362
          %1406 = vst.msk [vmem:[%s500 + $0x50] sm:$0xff] %vm1379, %v1364
          %1407 = vst.msk [vmem:[%s500 + $0x58] sm:$0xff] %vm1379, %v1366
          %1408 = vst.msk [vmem:[%s500 + $0x60] sm:$0xff] %vm1379, %v1368
          %1409 = vst.msk [vmem:[%s500 + $0x68] sm:$0xff] %vm1379, %v1370
          %1410 = vst.msk [vmem:[%s500 + $0x70] sm:$0xff] %vm1379, %v1372
          %1411 = vst.msk [vmem:[%s500 + $0x78] sm:$0xff] %vm1379, %v1374
        $region85: #{tpu_custom_call.1} parent=76 // pred_fallthru
          _
        %p1412 = scmp.ne.s32.totalorder %s27, 0
        // Predicated region
        $region86: #{tpu_custom_call.1} parent=76 // pred_check
          %p1413 = pneg %p1412
        $region87: #{tpu_custom_call.1} parent=76 // pred_check_branch
          %1415 = sbr.rel (%p1413) target = $region89
        $region88: #{tpu_custom_call.1} parent=76 // pred_region
          %v1416 = vld [vmem:[%s494] sm:$0xff]
          %v1417 = vld [vmem:[%s494 + $0x8] sm:$0xff]
          %v1418 = vld [vmem:[%s494 + $0x10] sm:$0xff]
          %v1419 = vld [vmem:[%s494 + $0x18] sm:$0xff]
          %v1420 = vld [vmem:[%s494 + $0x20] sm:$0xff]
          %v1421 = vld [vmem:[%s494 + $0x28] sm:$0xff]
          %v1422 = vld [vmem:[%s494 + $0x30] sm:$0xff]
          %v1423 = vld [vmem:[%s494 + $0x38] sm:$0xff]
          %v1424 = vld [vmem:[%s494 + $0x40] sm:$0xff]
          %v1425 = vld [vmem:[%s494 + $0x48] sm:$0xff]
          %v1426 = vld [vmem:[%s494 + $0x50] sm:$0xff]
          %v1427 = vld [vmem:[%s494 + $0x58] sm:$0xff]
          %v1428 = vld [vmem:[%s494 + $0x60] sm:$0xff]
          %v1429 = vld [vmem:[%s494 + $0x68] sm:$0xff]
          %v1430 = vld [vmem:[%s494 + $0x70] sm:$0xff]
          %v1431 = vld [vmem:[%s494 + $0x78] sm:$0xff]
          %v1432 = vadd.f32 %v1416, %v960
          %v1433 = vadd.f32 %v1417, %v962
          %v1434 = vadd.f32 %v1418, %v964
          %v1435 = vadd.f32 %v1419, %v966
          %v1436 = vadd.f32 %v1420, %v968
          %v1437 = vadd.f32 %v1421, %v970
          %v1438 = vadd.f32 %v1422, %v972
          %v1439 = vadd.f32 %v1423, %v974
          %v1440 = vadd.f32 %v1424, %v976
          %v1441 = vadd.f32 %v1425, %v978
          %v1442 = vadd.f32 %v1426, %v980
          %v1443 = vadd.f32 %v1427, %v982
          %v1444 = vadd.f32 %v1428, %v984
          %v1445 = vadd.f32 %v1429, %v986
          %v1446 = vadd.f32 %v1430, %v988
          %v1447 = vadd.f32 %v1431, %v990
          %vm1448 = vcmask 7168
          %1449 = vst.msk [vmem:[%s494] sm:$0xff] %vm1448, %v1432
          %1450 = vst.msk [vmem:[%s494 + $0x8] sm:$0xff] %vm1448, %v1433
          %1451 = vst.msk [vmem:[%s494 + $0x10] sm:$0xff] %vm1448, %v1434
          %1452 = vst.msk [vmem:[%s494 + $0x18] sm:$0xff] %vm1448, %v1435
          %1453 = vst.msk [vmem:[%s494 + $0x20] sm:$0xff] %vm1448, %v1436
          %1454 = vst.msk [vmem:[%s494 + $0x28] sm:$0xff] %vm1448, %v1437
          %1455 = vst.msk [vmem:[%s494 + $0x30] sm:$0xff] %vm1448, %v1438
          %1456 = vst.msk [vmem:[%s494 + $0x38] sm:$0xff] %vm1448, %v1439
          %1457 = vst.msk [vmem:[%s494 + $0x40] sm:$0xff] %vm1448, %v1440
          %1458 = vst.msk [vmem:[%s494 + $0x48] sm:$0xff] %vm1448, %v1441
          %1459 = vst.msk [vmem:[%s494 + $0x50] sm:$0xff] %vm1448, %v1442
          %1460 = vst.msk [vmem:[%s494 + $0x58] sm:$0xff] %vm1448, %v1443
          %1461 = vst.msk [vmem:[%s494 + $0x60] sm:$0xff] %vm1448, %v1444
          %1462 = vst.msk [vmem:[%s494 + $0x68] sm:$0xff] %vm1448, %v1445
          %1463 = vst.msk [vmem:[%s494 + $0x70] sm:$0xff] %vm1448, %v1446
          %1464 = vst.msk [vmem:[%s494 + $0x78] sm:$0xff] %vm1448, %v1447
          %v1465 = vld [vmem:[%s500] sm:$0xff]
          %v1466 = vld [vmem:[%s500 + $0x8] sm:$0xff]
          %v1467 = vld [vmem:[%s500 + $0x10] sm:$0xff]
          %v1468 = vld [vmem:[%s500 + $0x18] sm:$0xff]
          %v1469 = vld [vmem:[%s500 + $0x20] sm:$0xff]
          %v1470 = vld [vmem:[%s500 + $0x28] sm:$0xff]
          %v1471 = vld [vmem:[%s500 + $0x30] sm:$0xff]
          %v1472 = vld [vmem:[%s500 + $0x38] sm:$0xff]
          %v1473 = vld [vmem:[%s500 + $0x40] sm:$0xff]
          %v1474 = vld [vmem:[%s500 + $0x48] sm:$0xff]
          %v1475 = vld [vmem:[%s500 + $0x50] sm:$0xff]
          %v1476 = vld [vmem:[%s500 + $0x58] sm:$0xff]
          %v1477 = vld [vmem:[%s500 + $0x60] sm:$0xff]
          %v1478 = vld [vmem:[%s500 + $0x68] sm:$0xff]
          %v1479 = vld [vmem:[%s500 + $0x70] sm:$0xff]
          %v1480 = vld [vmem:[%s500 + $0x78] sm:$0xff]
          %v1481 = vmax.f32 %v1465, %v1344
          %v1482 = vmax.f32 %v1466, %v1346
          %v1483 = vmax.f32 %v1467, %v1348
          %v1484 = vmax.f32 %v1468, %v1350
          %v1485 = vmax.f32 %v1469, %v1352
          %v1486 = vmax.f32 %v1470, %v1354
          %v1487 = vmax.f32 %v1471, %v1356
          %v1488 = vmax.f32 %v1472, %v1358
          %v1489 = vmax.f32 %v1473, %v1360
          %v1490 = vmax.f32 %v1474, %v1362
          %v1491 = vmax.f32 %v1475, %v1364
          %v1492 = vmax.f32 %v1476, %v1366
          %v1493 = vmax.f32 %v1477, %v1368
          %v1494 = vmax.f32 %v1478, %v1370
          %v1495 = vmax.f32 %v1479, %v1372
          %v1496 = vmax.f32 %v1480, %v1374
          %1497 = vst.msk [vmem:[%s500] sm:$0xff] %vm1448, %v1481
          %1498 = vst.msk [vmem:[%s500 + $0x8] sm:$0xff] %vm1448, %v1482
          %1499 = vst.msk [vmem:[%s500 + $0x10] sm:$0xff] %vm1448, %v1483
          %1500 = vst.msk [vmem:[%s500 + $0x18] sm:$0xff] %vm1448, %v1484
          %1501 = vst.msk [vmem:[%s500 + $0x20] sm:$0xff] %vm1448, %v1485
          %1502 = vst.msk [vmem:[%s500 + $0x28] sm:$0xff] %vm1448, %v1486
          %1503 = vst.msk [vmem:[%s500 + $0x30] sm:$0xff] %vm1448, %v1487
          %1504 = vst.msk [vmem:[%s500 + $0x38] sm:$0xff] %vm1448, %v1488
          %1505 = vst.msk [vmem:[%s500 + $0x40] sm:$0xff] %vm1448, %v1489
          %1506 = vst.msk [vmem:[%s500 + $0x48] sm:$0xff] %vm1448, %v1490
          %1507 = vst.msk [vmem:[%s500 + $0x50] sm:$0xff] %vm1448, %v1491
          %1508 = vst.msk [vmem:[%s500 + $0x58] sm:$0xff] %vm1448, %v1492
          %1509 = vst.msk [vmem:[%s500 + $0x60] sm:$0xff] %vm1448, %v1493
          %1510 = vst.msk [vmem:[%s500 + $0x68] sm:$0xff] %vm1448, %v1494
          %1511 = vst.msk [vmem:[%s500 + $0x70] sm:$0xff] %vm1448, %v1495
          %1512 = vst.msk [vmem:[%s500 + $0x78] sm:$0xff] %vm1448, %v1496
        $region89: #{tpu_custom_call.1} parent=76 // pred_fallthru
          _
        %s1513 = sand.u32 %s174, 1
        %s1514 = scalar_lea.sflag [#allocation4], %s1513
        %s1515 = sand.u32 %s174, 1
        %s1516 = smul.addr %s1515, 128
        %s1517 = scalar_lea.vmem [#allocation3], %s1516
        %s1518 = smul.u32 16, %s26
        %p1519 = scmp.lt.s32.totalorder %s1518, 15
        %s1520 = scalar_select %p1519, %s1518, 15
        %s1521 = smul.addr %s1520, 8
        %s1522 = scalar_lea.vmem %s6, %s1521
        %s1523 = smul.u32 16, %s26
        %p1524 = scmp.lt.s32.totalorder %s1523, 15
        %s1525 = scalar_select %p1524, %s1523, 15
        %s1526 = smul.addr %s1525, 8
        %s1527 = scalar_lea.vmem %s7, %s1526
        // Predicated region
        $region90: #{tpu_custom_call.1} parent=76 // pred_check
          %p1528 = pneg %p184
        $region91: #{tpu_custom_call.1} parent=76 // pred_check_branch
          %1530 = sbr.rel (%p1528) target = $region93
        $region92: #{tpu_custom_call.1} parent=76 // pred_region
          %s1531 = smul.u32 16, %s26
          %1533 = vsyncadd %s1514, 0
          %s1534 = smul.addr %s1531, 2
          %s1535 = sadd.s32 %s27, %s1534
          %s1536 = smul.addr %s1535, 8
          %s1537 = scalar_lea.hbm %s5, %s1536
          %s1538 = sshll.u32 %s1517, 4
          %s1539 = int_to_ptr.vmem [resolvable:$true] %s1538
          %s1540 = sshll.u32 %s1537, 4
          %s1541 = int_to_ptr.hbm [resolvable:$true] %s1540
          %1546 = dma.vmem_to_hbm [thread:$0]  %s1539, 2048, %s1541, %s1514, 128, 256, 8
        $region93: #{tpu_custom_call.1} parent=76 // pred_fallthru
          _
        // Predicated region
        $region94: #{tpu_custom_call.1} parent=76 // pred_check
          %p1547 = pneg %p210
        $region95: #{tpu_custom_call.1} parent=76 // pred_check_branch
          %1549 = sbr.rel (%p1547) target = $region97
        $region96: #{tpu_custom_call.1} parent=76 // pred_region
          %s1550 = smul.u32 16, %s26
        $region97: #{tpu_custom_call.1} parent=76 // pred_fallthru
          _
        // Predicated region
        $region98: #{tpu_custom_call.1} parent=76 // pred_check
          %p1551 = pneg %p236
        $region99: #{tpu_custom_call.1} parent=76 // pred_check_branch
          %1553 = sbr.rel (%p1551) target = $region101
        $region100: #{tpu_custom_call.1} parent=76 // pred_region
          %s1554 = smul.u32 16, %s26
        $region101: #{tpu_custom_call.1} parent=76 // pred_fallthru
          _
        // Predicated region
        $region102: #{tpu_custom_call.1} parent=76 // pred_check
          %p1555 = pneg %p210
        $region103: #{tpu_custom_call.1} parent=76 // pred_check_branch
          %1557 = sbr.rel (%p1555) target = $region105
        $region104: #{tpu_custom_call.1} parent=76 // pred_region
          %s1558 = smul.u32 16, %s26
          %p1559 = scmp.lt.s32.totalorder %s1558, 15
          %s1560 = scalar_select %p1559, %s1558, 15
          %s1561 = smul.addr %s1560, 8
          %s1562 = scalar_lea.vmem %s6, %s1561
        $region105: #{tpu_custom_call.1} parent=76 // pred_fallthru
          _
        // Predicated region
        $region106: #{tpu_custom_call.1} parent=76 // pred_check
          %p1563 = pneg %p236
        $region107: #{tpu_custom_call.1} parent=76 // pred_check_branch
          %1565 = sbr.rel (%p1563) target = $region109
        $region108: #{tpu_custom_call.1} parent=76 // pred_region
          %s1566 = smul.u32 16, %s26
          %p1567 = scmp.lt.s32.totalorder %s1566, 15
          %s1568 = scalar_select %p1567, %s1566, 15
          %s1569 = smul.addr %s1568, 8
          %s1570 = scalar_lea.vmem %s7, %s1569
        $region109: #{tpu_custom_call.1} parent=76 // pred_fallthru
          _
      $region77: #{tpu_custom_call.1} parent=5 // pred_fallthru
        _
      %p1571 = scmp.le.s32.totalorder 2, %s17
      // Predicated region
      $region110: #{tpu_custom_call.1} parent=5 // pred_check
        %p1572 = pneg %p1571
      $region111: #{tpu_custom_call.1} parent=5 // pred_check_branch
        %1574 = sbr.rel (%p1572) target = $region113
      $region112: #{tpu_custom_call.1} parent=5 // pred_region
        %s1575 = ssub.s32 %s17, 2
        // Predicated region
        $region114: #{tpu_custom_call.1} parent=112 // pred_check
          %p1576 = pneg %p190
        $region115: #{tpu_custom_call.1} parent=112 // pred_check_branch
          %1578 = sbr.rel (%p1576) target = $region117
        $region116: #{tpu_custom_call.1} parent=112 // pred_region
          %s1579 = sand.u32 %s175, 1
          %s1580 = scalar_lea.sflag [#allocation4], %s1579
          %s1581 = sand.u32 %s175, 1
          %s1582 = smul.addr %s1581, 128
          %s1583 = scalar_lea.vmem [#allocation3], %s1582
          %1585 = dma.done %s1580, 2048
        $region117: #{tpu_custom_call.1} parent=112 // pred_fallthru
          _
      $region113: #{tpu_custom_call.1} parent=5 // pred_fallthru
        _
    $region6: #{tpu_custom_call.1} parent=1 // loop_footer
      %s21 = sadd.s32 1, %s17
    $region7: #{tpu_custom_call.1} parent=1 // loop_footer_branch
      %16 = sbr.rel target = $region3
    $region8: #{tpu_custom_call.1} parent=1 // loop_exit
      _
    %1586 = vsyncpa [#allocation4], 1
    %s1587 = scalar_lea.sflag [#allocation4], 1
    %1588 = vsyncpa %s1587, 1

</llo_original>
